<compile_context>
chip_gen: v5e
topology: v5e:2x2
jax: 0.10.0
libtpu: 0.0.40
codegen_flags: <defaults>
</compile_context>

<pallas_src>
import functools
import math

import jax
import jax.numpy as jnp
import numpy as np
from jax import lax
from jax.experimental import pallas as pl
from jax.experimental.pallas import tpu as pltpu


# ----------------------------------------------------------------------------
# Kernel 1: BatchEnsemble projection  y = ((x * r) @ W) * s + b
# ----------------------------------------------------------------------------
def _be_proj_kernel(x_ref, r_ref, s_ref, w_ref, b_ref, o_ref, *, matmul_dtype):
    # x:[1,bt,Hin] r:[1,1,Hin] s:[1,1,bo] w:[Hin,bo] b:[1,bo] -> o:[1,bt,bo]
    xr = (x_ref[0] * r_ref[0]).astype(matmul_dtype)
    mm = jnp.dot(xr, w_ref[...], preferred_element_type=jnp.float32)   # [bt,bo] f32
    y = mm * s_ref[0] + b_ref[...]
    o_ref[0] = y.astype(o_ref.dtype)


def be_proj(x, r, s, w_t, b, matmul_dtype, *, block_t=512, block_o=512):
    """x:[B,T,Hin], r:[B,Hin], s:[B,Hout], w_t:[Hin,Hout] (pre-cast), b:[Hout]."""
    B, T, Hin = x.shape
    Hout = w_t.shape[1]
    bt = T if T <= block_t else block_t          # full dim or multiple of 8
    bo = Hout if Hout <= block_o else block_o    # full dim or multiple of 128
    grid = (B, pl.cdiv(T, bt), pl.cdiv(Hout, bo))

    r3 = r.reshape(B, 1, Hin)
    s3 = s.reshape(B, 1, Hout)
    b2 = b.reshape(1, Hout)
    kern = functools.partial(_be_proj_kernel, matmul_dtype=matmul_dtype)
    return pl.pallas_call(
        kern,
        out_shape=jax.ShapeDtypeStruct((B, T, Hout), x.dtype),
        grid=grid,
        in_specs=[
            pl.BlockSpec((1, bt, Hin), lambda bi, ti, oi: (bi, ti, 0)),
            pl.BlockSpec((1, 1, Hin), lambda bi, ti, oi: (bi, 0, 0)),
            pl.BlockSpec((1, 1, bo), lambda bi, ti, oi: (bi, 0, oi)),
            pl.BlockSpec((Hin, bo), lambda bi, ti, oi: (0, oi)),
            pl.BlockSpec((1, bo), lambda bi, ti, oi: (0, oi)),
        ],
        out_specs=pl.BlockSpec((1, bt, bo), lambda bi, ti, oi: (bi, ti, oi)),
        compiler_params=pltpu.CompilerParams(
            dimension_semantics=("parallel", "parallel", "parallel")),
    )(x, r3, s3, w_t, b2)


# ----------------------------------------------------------------------------
# Kernel 2: per-(batch, head) relative attention
#   AC/BD score matmuls + exact relative shift + f32 softmax + attention*V
# ----------------------------------------------------------------------------
def _rel_shift_crop(bd, len_k):
    """Exact in-VMEM equivalent of RelativeShift.forward(bd)[:, :len_k].

    Reproduces the PyTorch zero-pad + view trick (including the values that
    wrap into the next row) with static concats and log2(Q) masked per-row
    lane shifts.  Valid for the usual len_r >= len_q - 1 regime."""
    Q, R = bd.shape
    dt = bd.dtype
    # Row q of the shifted result reads bd[q, t], the zero pad (t == R) or
    # bd[q+1, t-R-1], with t = j + (Q-1-q).  Build the extended row buffer:
    bd_next = jnp.concatenate([bd[1:, :], jnp.zeros((1, R), dt)], axis=0)
    ext = jnp.concatenate([bd, jnp.zeros((Q, 1), dt), bd_next], axis=1)  # [Q, 2R+1]

    # Per-row left shift by (Q-1-q), via binary decomposition of the amount.
    shift = (Q - 1) - lax.broadcasted_iota(jnp.int32, (Q, 1), 0)          # [Q, 1]
    x = ext
    bit = 0
    max_shift = Q - 1
    while (1 << bit) <= max_shift:
        s = 1 << bit
        rolled = jnp.concatenate([x[:, s:], jnp.zeros((Q, s), dt)], axis=1)
        x = jnp.where((shift & s) != 0, rolled, x)
        bit += 1
    return x[:, :len_k]


def _rel_attn_kernel(q_ref, k_ref, v_ref, rk_ref, rwb_ref, rrb_ref, ctx_ref,
                     *maybe_probs, scale, matmul_dtype, write_probs):
    # q/k/v:[1,1,T,D] rk:[1,1,R,D] rwb/rrb:[1,1,D] -> ctx:[1,1,T,D] (probs:[1,1,T,T])
    q = q_ref[0, 0]                     # [T, D]
    k = k_ref[0, 0]                     # [T, D]
    v = v_ref[0, 0]                     # [T, D]
    rk = rk_ref[0, 0]                   # [R, D]
    rwb = rwb_ref[0]                    # [1, D]
    rrb = rrb_ref[0]                    # [1, D]
    T = q.shape[0]

    # Fold scale into the [T, D] operands (cheaper than scaling [T, T] scores).
    rw_q = ((q + rwb) * scale).astype(matmul_dtype)
    rr_q = ((q + rrb) * scale).astype(matmul_dtype)

    dn = (((1,), (1,)), ((), ()))       # contract on D, no batch dims
    ac = lax.dot_general(rw_q, k.astype(matmul_dtype), dn,
                         preferred_element_type=jnp.float32)        # [T, T]
    bd = lax.dot_general(rr_q, rk.astype(matmul_dtype), dn,
                         preferred_element_type=jnp.float32)        # [T, R]

    scores = ac + _rel_shift_crop(bd, T)                            # [T, T] f32

    # f32 softmax with exact normalization (coverage is returned to the caller).
    m = jnp.max(scores, axis=-1, keepdims=True)
    e = jnp.exp(scores - m)
    denom = jnp.sum(e, axis=-1, keepdims=True)
    p = e / denom

    if write_probs:
        maybe_probs[0][0, 0] = p.astype(maybe_probs[0].dtype)
    ctx = jnp.dot(p.astype(matmul_dtype), v.astype(matmul_dtype),
                  preferred_element_type=jnp.float32)               # [T, D]
    ctx_ref[0, 0] = ctx.astype(ctx_ref.dtype)


def rel_attention(q, k, v, rk, rwb, rrb, *, ensemble, scale, matmul_dtype,
                  return_coverage, coverage_dtype):
    """q/k/v:[B,heads,T,D], rk:[ens,heads,R,D], rwb/rrb:[heads,1,D]."""
    B, NH, T, D = q.shape
    R = rk.shape[2]
    ens = ensemble

    kern = functools.partial(_rel_attn_kernel, scale=scale,
                             matmul_dtype=matmul_dtype,
                             write_probs=return_coverage)

    out_shape = [jax.ShapeDtypeStruct((B, NH, T, D), q.dtype)]
    out_specs = [pl.BlockSpec((1, 1, T, D), lambda b, h: (b, h, 0, 0))]
    if return_coverage:
        out_shape.append(jax.ShapeDtypeStruct((B, NH, T, T), coverage_dtype))
        out_specs.append(pl.BlockSpec((1, 1, T, T), lambda b, h: (b, h, 0, 0)))

    res = pl.pallas_call(
        kern,
        out_shape=tuple(out_shape),
        grid=(B, NH),
        in_specs=[
            pl.BlockSpec((1, 1, T, D), lambda b, h: (b, h, 0, 0)),
            pl.BlockSpec((1, 1, T, D), lambda b, h: (b, h, 0, 0)),
            pl.BlockSpec((1, 1, T, D), lambda b, h: (b, h, 0, 0)),
            pl.BlockSpec((1, 1, R, D), lambda b, h: (b % ens, h, 0, 0)),
            pl.BlockSpec((1, 1, D), lambda b, h: (h, 0, 0)),
            pl.BlockSpec((1, 1, D), lambda b, h: (h, 0, 0)),
        ],
        out_specs=tuple(out_specs),
        compiler_params=pltpu.CompilerParams(
            dimension_semantics=("parallel", "parallel"),
            vmem_limit_bytes=48 * 1024 * 1024),
    )(q, k, v, rk, rwb, rrb)

    if return_coverage:
        return res[0], res[1]
    return res[0], None


# ----------------------------------------------------------------------------
# Kernel 3: output projection  y = x @ W_out + b_out
# ----------------------------------------------------------------------------
def _out_proj_kernel(x_ref, w_ref, b_ref, o_ref, *, matmul_dtype):
    y = jnp.dot(x_ref[...].astype(matmul_dtype), w_ref[...],
                preferred_element_type=jnp.float32) + b_ref[...]
    o_ref[...] = y.astype(o_ref.dtype)


def out_proj(x, w_t, b, matmul_dtype, *, block_n=512, block_o=512):
    """x:[N,H], w_t:[H,Hout] (pre-cast), b:[Hout] -> [N,Hout]."""
    N, H = x.shape
    Hout = w_t.shape[1]
    bn = N if N <= block_n else block_n
    bo = Hout if Hout <= block_o else block_o
    kern = functools.partial(_out_proj_kernel, matmul_dtype=matmul_dtype)
    return pl.pallas_call(
        kern,
        out_shape=jax.ShapeDtypeStruct((N, Hout), x.dtype),
        grid=(pl.cdiv(N, bn), pl.cdiv(Hout, bo)),
        in_specs=[
            pl.BlockSpec((bn, H), lambda i, j: (i, 0)),
            pl.BlockSpec((H, bo), lambda i, j: (0, j)),
            pl.BlockSpec((1, bo), lambda i, j: (0, j)),
        ],
        out_specs=pl.BlockSpec((bn, bo), lambda i, j: (i, j)),
        compiler_params=pltpu.CompilerParams(
            dimension_semantics=("parallel", "parallel")),
    )(x, w_t, b.reshape(1, Hout))


# ----------------------------------------------------------------------------
# Full forward (training path of BERelativeSelfMultiheadAttn)
# ----------------------------------------------------------------------------
def be_relative_attn_forward(inp_tbh, pos_r1h, params, num_heads,
                             matmul_dtype=None, return_coverage=True,
                             coverage_dtype=None):
    """inp:[T,B,H], pos:[R,1,H] -> (outputs:[T,B,H], coverage:[B*heads,T,T] | None)."""
    T, B, H = inp_tbh.shape
    R = pos_r1h.shape[0]
    D = H // num_heads
    ens = params["r_i"].shape[0]
    scale = D ** (-0.5)
    if matmul_dtype is None:
        matmul_dtype = inp_tbh.dtype
    if coverage_dtype is None:
        coverage_dtype = inp_tbh.dtype

    # training-mode BatchEnsemble row selection: indices = arange(bsz) % ensemble
    idx = jnp.arange(B) % ens
    r_i, s_i = params["r_i"][idx], params["s_i"][idx]          # [B,H], [B,3H]

    x_bth = jnp.transpose(inp_tbh, (1, 0, 2))                  # [B,T,H]

    # NOTE: store weights pre-transposed / pre-cast in production; done once here.
    in_w_t = jnp.transpose(params["in_w"]).astype(matmul_dtype)      # [H, 3H]
    pos_w_t = jnp.transpose(params["pos_w"]).astype(matmul_dtype)    # [H, H]
    out_w_t = jnp.transpose(params["out_w"]).astype(matmul_dtype)    # [H, H]

    qkv = be_proj(x_bth, r_i, s_i, in_w_t, params["in_b"], matmul_dtype)  # [B,T,3H]

    # Positional projection once per ensemble member (dedup: B/ens fewer FLOPs).
    pos_eth = jnp.broadcast_to(pos_r1h[:, 0, :][None], (ens, R, H))       # [ens,R,H]
    rpos = be_proj(pos_eth, params["r_p"], params["s_p"], pos_w_t,
                   params["pos_b"], matmul_dtype)                         # [ens,R,H]

    # Lane-aligned, head-major layouts for the (batch, head) attention grid.
    qkv5 = qkv.reshape(B, T, num_heads, 3, D)
    q = jnp.transpose(qkv5[:, :, :, 0, :], (0, 2, 1, 3))       # [B,heads,T,D]
    k = jnp.transpose(qkv5[:, :, :, 1, :], (0, 2, 1, 3))
    v = jnp.transpose(qkv5[:, :, :, 2, :], (0, 2, 1, 3))
    rk = jnp.transpose(rpos.reshape(ens, R, num_heads, D), (0, 2, 1, 3))  # [ens,heads,R,D]

    rwb = params["r_w_bias"].reshape(num_heads, 1, D)
    rrb = params["r_r_bias"].reshape(num_heads, 1, D)

    ctx, probs = rel_attention(q, k, v, rk, rwb, rrb, ensemble=ens, scale=scale,
                               matmul_dtype=matmul_dtype,
                               return_coverage=return_coverage,
                               coverage_dtype=coverage_dtype)   # [B,heads,T,D]

    # Rows ordered (t, b) to match the PyTorch [len_q, bsz, H] output layout.
    ctx_tbh = jnp.transpose(ctx, (2, 0, 1, 3)).reshape(T * B, H)
    out = out_proj(ctx_tbh, out_w_t, params["out_b"], matmul_dtype)
    out = out.reshape(T, B, H)

    coverage = None
    if return_coverage:
        coverage = probs.reshape(B * num_heads, T, T)
    return out, coverage


# ----------------------------------------------------------------------------
# Parameter init (mirrors BERelativeSelfMultiheadAttn.reset_parameters)
# ----------------------------------------------------------------------------
def init_params(key, embed_dim, num_heads, ensemble):
    head_dim = embed_dim // num_heads
    std = math.sqrt(2.0 / (embed_dim + embed_dim))
    ks = jax.random.split(key, 9)

    def sign(k, shape):
        return 1.0 - 2.0 * jax.random.bernoulli(k, 0.5, shape).astype(jnp.float32)

    return dict(
        in_w=jax.random.normal(ks[0], (3 * embed_dim, embed_dim), jnp.float32) * std,
        out_w=jax.random.normal(ks[1], (embed_dim, embed_dim), jnp.float32) * std,
        pos_w=jax.random.normal(ks[2], (embed_dim, embed_dim), jnp.float32) * std,
        in_b=jnp.zeros((3 * embed_dim,), jnp.float32),
        out_b=jnp.zeros((embed_dim,), jnp.float32),
        pos_b=jnp.zeros((embed_dim,), jnp.float32),
        r_i=sign(ks[3], (ensemble, embed_dim)),
        s_i=sign(ks[4], (ensemble, 3 * embed_dim)),
        r_p=sign(ks[5], (ensemble, embed_dim)),
        s_p=sign(ks[6], (ensemble, embed_dim)),
        r_w_bias=jax.random.normal(ks[7], (num_heads, head_dim), jnp.float32) * 0.02,
        r_r_bias=jax.random.normal(ks[8], (num_heads, head_dim), jnp.float32) * 0.02,
    )


# ----------------------------------------------------------------------------
# Pure-JAX reference (direct transcription of the PyTorch forward)
# ----------------------------------------------------------------------------
def _reference_rel_shift(x):
    # exact RelativeShift.forward (batch_first=True) via the pad+reshape trick
    B, Q, R = x.shape
    zero_pad = jnp.zeros((B, Q, 1), x.dtype)
    x_padded = jnp.concatenate([zero_pad, x], axis=2)   # [B, Q, R+1]
    x_view = x_padded.reshape(B, R + 1, Q)
    return x_view[:, 1:, :].reshape(B, Q, R)


def reference_forward(inp, pos, params, num_heads):
    T, B, H = inp.shape
    R = pos.shape[0]
    D = H // num_heads
    ens = params["r_i"].shape[0]
    scale = D ** (-0.5)
    hp = jax.lax.Precision.HIGHEST

    idx = jnp.arange(B) % ens
    r_i, s_i = params["r_i"][idx], params["s_i"][idx]
    r_p, s_p = params["r_p"][idx], params["s_p"][idx]
    pos_b = jnp.broadcast_to(pos, (R, B, H))

    def be_mm(x, w, b, r, s):
        x_r = x * r[None]
        x_mm = jnp.einsum("tbh,oh->tbo", x_r, w, precision=hp)
        return x_mm * s[None] + b

    qkv = be_mm(inp, params["in_w"], params["in_b"], r_i, s_i)         # [T,B,3H]
    rpos = be_mm(pos_b, params["pos_w"], params["pos_b"], r_p, s_p)    # [R,B,H]

    qkv = qkv.reshape(T, B * num_heads, 3, D)
    q, k, v = qkv[:, :, 0], qkv[:, :, 1], qkv[:, :, 2]
    rk = rpos.reshape(R, B * num_heads, D)
    rw_q = (q.reshape(T, B, num_heads, D) + params["r_w_bias"]).reshape(T, B * num_heads, D)
    rr_q = (q.reshape(T, B, num_heads, D) + params["r_r_bias"]).reshape(T, B * num_heads, D)
    ac = jnp.einsum("qnd,knd->nqk", rw_q, k, precision=hp) * scale
    bd = jnp.einsum("qnd,rnd->nqr", rr_q, rk, precision=hp) * scale
    bd = _reference_rel_shift(bd)[:, :, :T]
    scores = ac + bd
    probs = jax.nn.softmax(scores.astype(jnp.float32), axis=-1).astype(scores.dtype)
    ctx = jnp.einsum("nqk,knd->qnd", probs, v, precision=hp).reshape(T, B, H)
    out = jnp.einsum("tbh,oh->tbo", ctx, params["out_w"], precision=hp) + params["out_b"]
    return out, probs


# ----------------------------------------------------------------------------
if __name__ == "__main__":
    embed_dim, num_heads, ensemble = 32, 4, 2
    T, B, R = 8, 2, 8  # len_q, batch, len_r

    key = jax.random.PRNGKey(0)
    k_inp, k_pos, k_par, k_pos2 = jax.random.split(key, 4)
    inp = jax.random.normal(k_inp, (T, B, embed_dim), jnp.float32)   # [len_q, bsz, H]
    pos = jax.random.normal(k_pos, (R, 1, embed_dim), jnp.float32)   # [len_r, 1, H]
    params = init_params(k_par, embed_dim, num_heads, ensemble)

    fwd = jax.jit(functools.partial(be_relative_attn_forward, num_heads=num_heads))

    # Case 1: len_r == len_q (exercises the wrap rows of the relative shift)
    out, cov = fwd(inp, pos, params)
    out = jax.block_until_ready(out)
    cov = jax.block_until_ready(cov)
    ref_out, ref_cov = reference_forward(inp, pos, params, num_heads)
    np.testing.assert_allclose(np.asarray(out), np.asarray(ref_out), rtol=1e-2, atol=1e-2)
    np.testing.assert_allclose(np.asarray(cov), np.asarray(ref_cov), rtol=1e-2, atol=1e-2)

    # Case 2: len_r > len_q
    R2 = 12
    pos2 = jax.random.normal(k_pos2, (R2, 1, embed_dim), jnp.float32)
    out2, cov2 = fwd(inp, pos2, params)
    out2 = jax.block_until_ready(out2)
    cov2 = jax.block_until_ready(cov2)
    ref_out2, ref_cov2 = reference_forward(inp, pos2, params, num_heads)
    np.testing.assert_allclose(np.asarray(out2), np.asarray(ref_out2), rtol=1e-2, atol=1e-2)
    np.testing.assert_allclose(np.asarray(cov2), np.asarray(ref_cov2), rtol=1e-2, atol=1e-2)

    # Case 3: bf16 MXU operands + f32 accumulation (loose check vs f32 reference)
    fwd_bf16 = jax.jit(functools.partial(be_relative_attn_forward,
                                         num_heads=num_heads,
                                         matmul_dtype=jnp.bfloat16))
    out3, cov3 = fwd_bf16(inp, pos, params)
    out3 = jax.block_until_ready(out3)
    np.testing.assert_allclose(np.asarray(out3), np.asarray(ref_out), rtol=1e-1, atol=1e-1)
    np.testing.assert_allclose(np.asarray(cov3), np.asarray(ref_cov), rtol=1e-1, atol=1e-1)

    # Case 4: coverage dropped (skips the dominant HBM write entirely)
    fwd_nocov = jax.jit(functools.partial(be_relative_attn_forward,
                                          num_heads=num_heads,
                                          return_coverage=False))
    out4, cov4 = fwd_nocov(inp, pos, params)
    out4 = jax.block_until_ready(out4)
    assert cov4 is None
    np.testing.assert_allclose(np.asarray(out4), np.asarray(ref_out), rtol=1e-2, atol=1e-2)

    print("KERNEL_OK")
</pallas_src>

<mosaic_0001>
module attributes {stable_mosaic.version = 11 : i64} {
  func.func @_out_proj_kernel(%arg0: i32, %arg1: i32, %arg2: memref<16x32xf32, #tpu.memory_space<vmem>>, %arg3: memref<32x32xf32, #tpu.memory_space<vmem>>, %arg4: memref<1x32xf32, #tpu.memory_space<vmem>>, %arg5: memref<16x32xf32, #tpu.memory_space<vmem>>) attributes {dimension_semantics = [#tpu.dimension_semantics<parallel>, #tpu.dimension_semantics<parallel>], iteration_bounds = array<i64: 1, 1>, scalar_prefetch = 0 : i64, scratch_operands = 0 : i64, tpu.core_type = #tpu.core_type<tc>, window_params = [{transform_indices = @transform_0, window_bounds = array<i64: 16, 32>}, {transform_indices = @transform_1, window_bounds = array<i64: 32, 32>}, {transform_indices = @transform_2, window_bounds = array<i64: 1, 32>}, {transform_indices = @transform_3, window_bounds = array<i64: 16, 32>}]} {
    %c0 = arith.constant 0 : index
    %c0_0 = arith.constant 0 : index
    %0 = vector.load %arg2[%c0, %c0_0] : memref<16x32xf32, #tpu.memory_space<vmem>>, vector<16x32xf32>
    %c0_1 = arith.constant 0 : index
    %c0_2 = arith.constant 0 : index
    %1 = vector.load %arg3[%c0_1, %c0_2] : memref<32x32xf32, #tpu.memory_space<vmem>>, vector<32x32xf32>
    %cst = arith.constant dense<0.000000e+00> : vector<16x32xf32>
    %2 = tpu.matmul %0, %1, %cst {dimension_numbers = #tpu.dot_dimension_numbers<[1], [0], [0], [1], [0, 0, 1, 1], [], []>} : vector<16x32xf32>, vector<32x32xf32>, vector<16x32xf32> -> vector<16x32xf32>
    %c0_3 = arith.constant 0 : index
    %c0_4 = arith.constant 0 : index
    %3 = vector.load %arg4[%c0_3, %c0_4] : memref<1x32xf32, #tpu.memory_space<vmem>>, vector<1x32xf32>
    %4 = vector.broadcast %3 : vector<1x32xf32> to vector<16x32xf32>
    %5 = arith.addf %2, %4 : vector<16x32xf32>
    %c0_5 = arith.constant 0 : index
    %c0_6 = arith.constant 0 : index
    %6 = vector.load %arg5[%c0_5, %c0_6] : memref<16x32xf32, #tpu.memory_space<vmem>>, vector<16x32xf32>
    tpu.vector_store %arg5[%c0_5, %c0_6], %5 {strides = array<i32>} : memref<16x32xf32, #tpu.memory_space<vmem>>, vector<16x32xf32>,
    return
  }
  func.func @transform_0(%arg0: i32, %arg1: i32) -> (i32, i32) {
    %c0_i32 = arith.constant 0 : i32
    %c0_i32_0 = arith.constant 0 : i32
    return %arg0, %c0_i32 : i32, i32
  }
  func.func @transform_1(%arg0: i32, %arg1: i32) -> (i32, i32) {
    %c0_i32 = arith.constant 0 : i32
    %c0_i32_0 = arith.constant 0 : i32
    return %c0_i32, %arg1 : i32, i32
  }
  func.func @transform_2(%arg0: i32, %arg1: i32) -> (i32, i32) {
    %c0_i32 = arith.constant 0 : i32
    %c0_i32_0 = arith.constant 0 : i32
    return %c0_i32, %arg1 : i32, i32
  }
  func.func @transform_3(%arg0: i32, %arg1: i32) -> (i32, i32) {
    %c0_i32 = arith.constant 0 : i32
    return %arg0, %arg1 : i32, i32
  }
}

module attributes {stable_mosaic.version = 11 : i64} {
  func.func @_be_proj_kernel(%arg0: i32, %arg1: i32, %arg2: i32, %arg3: memref<1x8x32xf32, #tpu.memory_space<vmem>>, %arg4: memref<1x1x32xf32, #tpu.memory_space<vmem>>, %arg5: memref<1x1x32xf32, #tpu.memory_space<vmem>>, %arg6: memref<32x32xf32, #tpu.memory_space<vmem>>, %arg7: memref<1x32xf32, #tpu.memory_space<vmem>>, %arg8: memref<1x8x32xf32, #tpu.memory_space<vmem>>) attributes {dimension_semantics = [#tpu.dimension_semantics<parallel>, #tpu.dimension_semantics<parallel>, #tpu.dimension_semantics<parallel>], iteration_bounds = array<i64: 2, 1, 1>, scalar_prefetch = 0 : i64, scratch_operands = 0 : i64, tpu.core_type = #tpu.core_type<tc>, window_params = [{transform_indices = @transform_0, window_bounds = array<i64: 1, 8, 32>}, {transform_indices = @transform_1, window_bounds = array<i64: 1, 1, 32>}, {transform_indices = @transform_2, window_bounds = array<i64: 1, 1, 32>}, {transform_indices = @transform_3, window_bounds = array<i64: 32, 32>}, {transform_indices = @transform_4, window_bounds = array<i64: 1, 32>}, {transform_indices = @transform_5, window_bounds = array<i64: 1, 8, 32>}]} {
    %c0 = arith.constant 0 : index
    %c0_0 = arith.constant 0 : index
    %c0_1 = arith.constant 0 : index
    %0 = vector.load %arg3[%c0, %c0_0, %c0_1] : memref<1x8x32xf32, #tpu.memory_space<vmem>>, vector<1x8x32xf32>
    %1 = vector.shape_cast %0 : vector<1x8x32xf32> to vector<8x32xf32>
    %c0_2 = arith.constant 0 : index
    %c0_3 = arith.constant 0 : index
    %c0_4 = arith.constant 0 : index
    %2 = vector.load %arg4[%c0_2, %c0_3, %c0_4] : memref<1x1x32xf32, #tpu.memory_space<vmem>>, vector<1x1x32xf32>
    %3 = vector.shape_cast %2 : vector<1x1x32xf32> to vector<1x32xf32>
    %4 = vector.broadcast %3 : vector<1x32xf32> to vector<8x32xf32>
    %5 = arith.mulf %1, %4 : vector<8x32xf32>
    %c0_5 = arith.constant 0 : index
    %c0_6 = arith.constant 0 : index
    %6 = vector.load %arg6[%c0_5, %c0_6] : memref<32x32xf32, #tpu.memory_space<vmem>>, vector<32x32xf32>
    %cst = arith.constant dense<0.000000e+00> : vector<8x32xf32>
    %7 = tpu.matmul %5, %6, %cst {dimension_numbers = #tpu.dot_dimension_numbers<[1], [0], [0], [1], [0, 0, 1, 1], [], []>} : vector<8x32xf32>, vector<32x32xf32>, vector<8x32xf32> -> vector<8x32xf32>
    %c0_7 = arith.constant 0 : index
    %c0_8 = arith.constant 0 : index
    %c0_9 = arith.constant 0 : index
    %8 = vector.load %arg5[%c0_7, %c0_8, %c0_9] : memref<1x1x32xf32, #tpu.memory_space<vmem>>, vector<1x1x32xf32>
    %9 = vector.shape_cast %8 : vector<1x1x32xf32> to vector<1x32xf32>
    %10 = vector.broadcast %9 : vector<1x32xf32> to vector<8x32xf32>
    %11 = arith.mulf %7, %10 : vector<8x32xf32>
    %c0_10 = arith.constant 0 : index
    %c0_11 = arith.constant 0 : index
    %12 = vector.load %arg7[%c0_10, %c0_11] : memref<1x32xf32, #tpu.memory_space<vmem>>, vector<1x32xf32>
    %13 = vector.broadcast %12 : vector<1x32xf32> to vector<8x32xf32>
    %14 = arith.addf %11, %13 : vector<8x32xf32>
    %c0_12 = arith.constant 0 : index
    %c0_13 = arith.constant 0 : index
    %c0_14 = arith.constant 0 : index
    %15 = vector.load %arg8[%c0_12, %c0_13, %c0_14] : memref<1x8x32xf32, #tpu.memory_space<vmem>>, vector<1x8x32xf32>
    %16 = vector.shape_cast %15 : vector<1x8x32xf32> to vector<8x32xf32>
    %17 = vector.shape_cast %14 : vector<8x32xf32> to vector<1x8x32xf32>
    tpu.vector_store %arg8[%c0_12, %c0_13, %c0_14], %17 {strides = array<i32>} : memref<1x8x32xf32, #tpu.memory_space<vmem>>, vector<1x8x32xf32>,
    return
  }
  func.func @transform_0(%arg0: i32, %arg1: i32, %arg2: i32) -> (i32, i32, i32) {
    %c0_i32 = arith.constant 0 : i32
    %c0_i32_0 = arith.constant 0 : i32
    return %arg0, %arg1, %c0_i32 : i32, i32, i32
  }
  func.func @transform_1(%arg0: i32, %arg1: i32, %arg2: i32) -> (i32, i32, i32) {
    %c0_i32 = arith.constant 0 : i32
    %c0_i32_0 = arith.constant 0 : i32
    %c0_i32_1 = arith.constant 0 : i32
    return %arg0, %c0_i32, %c0_i32_0 : i32, i32, i32
  }
  func.func @transform_2(%arg0: i32, %arg1: i32, %arg2: i32) -> (i32, i32, i32) {
    %c0_i32 = arith.constant 0 : i32
    %c0_i32_0 = arith.constant 0 : i32
    return %arg0, %c0_i32, %arg2 : i32, i32, i32
  }
  func.func @transform_3(%arg0: i32, %arg1: i32, %arg2: i32) -> (i32, i32) {
    %c0_i32 = arith.constant 0 : i32
    %c0_i32_0 = arith.constant 0 : i32
    return %c0_i32, %arg2 : i32, i32
  }
  func.func @transform_4(%arg0: i32, %arg1: i32, %arg2: i32) -> (i32, i32) {
    %c0_i32 = arith.constant 0 : i32
    %c0_i32_0 = arith.constant 0 : i32
    return %c0_i32, %arg2 : i32, i32
  }
  func.func @transform_5(%arg0: i32, %arg1: i32, %arg2: i32) -> (i32, i32, i32) {
    %c0_i32 = arith.constant 0 : i32
    return %arg0, %arg1, %arg2 : i32, i32, i32
  }
}

module attributes {stable_mosaic.version = 11 : i64} {
  func.func @_rel_attn_kernel(%arg0: i32, %arg1: i32, %arg2: memref<1x1x8x8xf32, #tpu.memory_space<vmem>>, %arg3: memref<1x1x8x8xf32, #tpu.memory_space<vmem>>, %arg4: memref<1x1x8x8xf32, #tpu.memory_space<vmem>>, %arg5: memref<1x1x8x8xf32, #tpu.memory_space<vmem>>, %arg6: memref<1x1x8xf32, #tpu.memory_space<vmem>>, %arg7: memref<1x1x8xf32, #tpu.memory_space<vmem>>, %arg8: memref<1x1x8x8xf32, #tpu.memory_space<vmem>>, %arg9: memref<1x1x8x8xf32, #tpu.memory_space<vmem>>) attributes {dimension_semantics = [#tpu.dimension_semantics<parallel>, #tpu.dimension_semantics<parallel>], iteration_bounds = array<i64: 2, 4>, scalar_prefetch = 0 : i64, scratch_operands = 0 : i64, tpu.core_type = #tpu.core_type<tc>, window_params = [{transform_indices = @transform_0, window_bounds = array<i64: 1, 1, 8, 8>}, {transform_indices = @transform_1, window_bounds = array<i64: 1, 1, 8, 8>}, {transform_indices = @transform_2, window_bounds = array<i64: 1, 1, 8, 8>}, {transform_indices = @transform_3, window_bounds = array<i64: 1, 1, 8, 8>}, {transform_indices = @transform_4, window_bounds = array<i64: 1, 1, 8>}, {transform_indices = @transform_5, window_bounds = array<i64: 1, 1, 8>}, {transform_indices = @transform_6, window_bounds = array<i64: 1, 1, 8, 8>}, {transform_indices = @transform_7, window_bounds = array<i64: 1, 1, 8, 8>}]} {
    %c0 = arith.constant 0 : index
    %c0_0 = arith.constant 0 : index
    %c0_1 = arith.constant 0 : index
    %c0_2 = arith.constant 0 : index
    %0 = vector.load %arg2[%c0, %c0_0, %c0_1, %c0_2] : memref<1x1x8x8xf32, #tpu.memory_space<vmem>>, vector<1x1x8x8xf32>
    %1 = vector.shape_cast %0 : vector<1x1x8x8xf32> to vector<8x8xf32>
    %c0_3 = arith.constant 0 : index
    %c0_4 = arith.constant 0 : index
    %c0_5 = arith.constant 0 : index
    %c0_6 = arith.constant 0 : index
    %2 = vector.load %arg3[%c0_3, %c0_4, %c0_5, %c0_6] : memref<1x1x8x8xf32, #tpu.memory_space<vmem>>, vector<1x1x8x8xf32>
    %3 = vector.shape_cast %2 : vector<1x1x8x8xf32> to vector<8x8xf32>
    %c0_7 = arith.constant 0 : index
    %c0_8 = arith.constant 0 : index
    %c0_9 = arith.constant 0 : index
    %c0_10 = arith.constant 0 : index
    %4 = vector.load %arg4[%c0_7, %c0_8, %c0_9, %c0_10] : memref<1x1x8x8xf32, #tpu.memory_space<vmem>>, vector<1x1x8x8xf32>
    %5 = vector.shape_cast %4 : vector<1x1x8x8xf32> to vector<8x8xf32>
    %c0_11 = arith.constant 0 : index
    %c0_12 = arith.constant 0 : index
    %c0_13 = arith.constant 0 : index
    %c0_14 = arith.constant 0 : index
    %6 = vector.load %arg5[%c0_11, %c0_12, %c0_13, %c0_14] : memref<1x1x8x8xf32, #tpu.memory_space<vmem>>, vector<1x1x8x8xf32>
    %7 = vector.shape_cast %6 : vector<1x1x8x8xf32> to vector<8x8xf32>
    %c0_15 = arith.constant 0 : index
    %c0_16 = arith.constant 0 : index
    %c0_17 = arith.constant 0 : index
    %8 = vector.load %arg6[%c0_15, %c0_16, %c0_17] : memref<1x1x8xf32, #tpu.memory_space<vmem>>, vector<1x1x8xf32>
    %9 = vector.shape_cast %8 : vector<1x1x8xf32> to vector<1x8xf32>
    %c0_18 = arith.constant 0 : index
    %c0_19 = arith.constant 0 : index
    %c0_20 = arith.constant 0 : index
    %10 = vector.load %arg7[%c0_18, %c0_19, %c0_20] : memref<1x1x8xf32, #tpu.memory_space<vmem>>, vector<1x1x8xf32>
    %11 = vector.shape_cast %10 : vector<1x1x8xf32> to vector<1x8xf32>
    %12 = vector.broadcast %9 : vector<1x8xf32> to vector<8x8xf32>
    %13 = arith.addf %1, %12 : vector<8x8xf32>
    %cst = arith.constant 0.353553385 : f32
    %14 = vector.broadcast %cst : f32 to vector<8x8xf32>
    %15 = arith.mulf %13, %14 : vector<8x8xf32>
    %16 = vector.broadcast %11 : vector<1x8xf32> to vector<8x8xf32>
    %17 = arith.addf %1, %16 : vector<8x8xf32>
    %cst_21 = arith.constant 0.353553385 : f32
    %18 = vector.broadcast %cst_21 : f32 to vector<8x8xf32>
    %19 = arith.mulf %17, %18 : vector<8x8xf32>
    %cst_22 = arith.constant dense<0.000000e+00> : vector<8x8xf32>
    %20 = tpu.matmul %15, %3, %cst_22 {dimension_numbers = #tpu.dot_dimension_numbers<[1], [1], [0], [0], [0, 0, 1, 0], [], []>} : vector<8x8xf32>, vector<8x8xf32>, vector<8x8xf32> -> vector<8x8xf32>
    %cst_23 = arith.constant dense<0.000000e+00> : vector<8x8xf32>
    %21 = tpu.matmul %19, %7, %cst_23 {dimension_numbers = #tpu.dot_dimension_numbers<[1], [1], [0], [0], [0, 0, 1, 0], [], []>} : vector<8x8xf32>, vector<8x8xf32>, vector<8x8xf32> -> vector<8x8xf32>
    %22 = vector.extract_strided_slice %21 {offsets = [1, 0], sizes = [7, 8], strides = [1, 1]} : vector<8x8xf32> to vector<7x8xf32>
    %cst_24 = arith.constant 0.000000e+00 : f32
    %23 = vector.broadcast %cst_24 : f32 to vector<1x8xf32>
    %24 = tpu.concatenate %22, %23 in 0 : vector<7x8xf32>, vector<1x8xf32> -> vector<8x8xf32>
    %cst_25 = arith.constant 0.000000e+00 : f32
    %25 = vector.broadcast %cst_25 : f32 to vector<8x1xf32>
    %26 = tpu.concatenate %21, %25, %24 in 1 : vector<8x8xf32>, vector<8x1xf32>, vector<8x8xf32> -> vector<8x17xf32>
    %27 = tpu.iota {dimensions = array<i32: 0>} : vector<8x1xi32>
    %c7_i32 = arith.constant 7 : i32
    %28 = vector.broadcast %c7_i32 : i32 to vector<8x1xi32>
    %29 = arith.subi %28, %27 : vector<8x1xi32>
    %30 = vector.extract_strided_slice %26 {offsets = [0, 1], sizes = [8, 16], strides = [1, 1]} : vector<8x17xf32> to vector<8x16xf32>
    %cst_26 = arith.constant 0.000000e+00 : f32
    %31 = vector.broadcast %cst_26 : f32 to vector<8x1xf32>
    %32 = tpu.concatenate %30, %31 in 1 : vector<8x16xf32>, vector<8x1xf32> -> vector<8x17xf32>
    %c1_i32 = arith.constant 1 : i32
    %33 = vector.broadcast %c1_i32 : i32 to vector<8x1xi32>
    %34 = arith.andi %29, %33 : vector<8x1xi32>
    %c0_i32 = arith.constant 0 : i32
    %35 = vector.broadcast %c0_i32 : i32 to vector<8x1xi32>
    %36 = arith.cmpi ne, %34, %35 : vector<8x1xi32>
    %37 = vector.shape_cast %36 : vector<8x1xi1> to vector<8x1xi1>
    %38 = vector.broadcast %37 : vector<8x1xi1> to vector<8x17xi1>
    %39 = arith.select %38, %32, %26 : vector<8x17xi1>, vector<8x17xf32>
    %40 = vector.extract_strided_slice %39 {offsets = [0, 2], sizes = [8, 15], strides = [1, 1]} : vector<8x17xf32> to vector<8x15xf32>
    %cst_27 = arith.constant 0.000000e+00 : f32
    %41 = vector.broadcast %cst_27 : f32 to vector<8x2xf32>
    %42 = tpu.concatenate %40, %41 in 1 : vector<8x15xf32>, vector<8x2xf32> -> vector<8x17xf32>
    %c2_i32 = arith.constant 2 : i32
    %43 = vector.broadcast %c2_i32 : i32 to vector<8x1xi32>
    %44 = arith.andi %29, %43 : vector<8x1xi32>
    %c0_i32_28 = arith.constant 0 : i32
    %45 = vector.broadcast %c0_i32_28 : i32 to vector<8x1xi32>
    %46 = arith.cmpi ne, %44, %45 : vector<8x1xi32>
    %47 = vector.shape_cast %46 : vector<8x1xi1> to vector<8x1xi1>
    %48 = vector.broadcast %47 : vector<8x1xi1> to vector<8x17xi1>
    %49 = arith.select %48, %42, %39 : vector<8x17xi1>, vector<8x17xf32>
    %50 = vector.extract_strided_slice %49 {offsets = [0, 4], sizes = [8, 13], strides = [1, 1]} : vector<8x17xf32> to vector<8x13xf32>
    %cst_29 = arith.constant 0.000000e+00 : f32
    %51 = vector.broadcast %cst_29 : f32 to vector<8x4xf32>
    %52 = tpu.concatenate %50, %51 in 1 : vector<8x13xf32>, vector<8x4xf32> -> vector<8x17xf32>
    %c4_i32 = arith.constant 4 : i32
    %53 = vector.broadcast %c4_i32 : i32 to vector<8x1xi32>
    %54 = arith.andi %29, %53 : vector<8x1xi32>
    %c0_i32_30 = arith.constant 0 : i32
    %55 = vector.broadcast %c0_i32_30 : i32 to vector<8x1xi32>
    %56 = arith.cmpi ne, %54, %55 : vector<8x1xi32>
    %57 = vector.shape_cast %56 : vector<8x1xi1> to vector<8x1xi1>
    %58 = vector.broadcast %57 : vector<8x1xi1> to vector<8x17xi1>
    %59 = arith.select %58, %52, %49 : vector<8x17xi1>, vector<8x17xf32>
    %60 = vector.extract_strided_slice %59 {offsets = [0, 0], sizes = [8, 8], strides = [1, 1]} : vector<8x17xf32> to vector<8x8xf32>
    %61 = arith.addf %20, %60 : vector<8x8xf32>
    %cst_31 = arith.constant dense<0xFF800000> : vector<8xf32>
    %62 = vector.multi_reduction <maximumf>, %61, %cst_31 [1] : vector<8x8xf32> to vector<8xf32>
    %63 = vector.shape_cast %62 : vector<8xf32> to vector<8x1xf32>
    %64 = vector.broadcast %63 : vector<8x1xf32> to vector<8x8xf32>
    %65 = arith.subf %61, %64 : vector<8x8xf32>
    %66 = math.exp %65 : vector<8x8xf32>
    %cst_32 = arith.constant dense<0.000000e+00> : vector<8xf32>
    %67 = vector.multi_reduction <add>, %66, %cst_32 [1] : vector<8x8xf32> to vector<8xf32>
    %68 = vector.shape_cast %67 : vector<8xf32> to vector<8x1xf32>
    %69 = vector.broadcast %68 : vector<8x1xf32> to vector<8x8xf32>
    %70 = arith.divf %66, %69 : vector<8x8xf32>
    %c0_33 = arith.constant 0 : index
    %c0_34 = arith.constant 0 : index
    %c0_35 = arith.constant 0 : index
    %c0_36 = arith.constant 0 : index
    %71 = vector.load %arg9[%c0_33, %c0_34, %c0_35, %c0_36] : memref<1x1x8x8xf32, #tpu.memory_space<vmem>>, vector<1x1x8x8xf32>
    %72 = vector.shape_cast %71 : vector<1x1x8x8xf32> to vector<8x8xf32>
    %73 = vector.shape_cast %70 : vector<8x8xf32> to vector<1x1x8x8xf32>
    tpu.vector_store %arg9[%c0_33, %c0_34, %c0_35, %c0_36], %73 {strides = array<i32>} : memref<1x1x8x8xf32, #tpu.memory_space<vmem>>, vector<1x1x8x8xf32>,
    %cst_37 = arith.constant dense<0.000000e+00> : vector<8x8xf32>
    %74 = tpu.matmul %70, %5, %cst_37 {dimension_numbers = #tpu.dot_dimension_numbers<[1], [0], [0], [1], [0, 0, 1, 1], [], []>} : vector<8x8xf32>, vector<8x8xf32>, vector<8x8xf32> -> vector<8x8xf32>
    %c0_38 = arith.constant 0 : index
    %c0_39 = arith.constant 0 : index
    %c0_40 = arith.constant 0 : index
    %c0_41 = arith.constant 0 : index
    %75 = vector.load %arg8[%c0_38, %c0_39, %c0_40, %c0_41] : memref<1x1x8x8xf32, #tpu.memory_space<vmem>>, vector<1x1x8x8xf32>
    %76 = vector.shape_cast %75 : vector<1x1x8x8xf32> to vector<8x8xf32>
    %77 = vector.shape_cast %74 : vector<8x8xf32> to vector<1x1x8x8xf32>
    tpu.vector_store %arg8[%c0_38, %c0_39, %c0_40, %c0_41], %77 {strides = array<i32>} : memref<1x1x8x8xf32, #tpu.memory_space<vmem>>, vector<1x1x8x8xf32>,
    return
  }
  func.func @transform_0(%arg0: i32, %arg1: i32) -> (i32, i32, i32, i32) {
    %c0_i32 = arith.constant 0 : i32
    %c0_i32_0 = arith.constant 0 : i32
    %c0_i32_1 = arith.constant 0 : i32
    return %arg0, %arg1, %c0_i32, %c0_i32_0 : i32, i32, i32, i32
  }
  func.func @transform_1(%arg0: i32, %arg1: i32) -> (i32, i32, i32, i32) {
    %c0_i32 = arith.constant 0 : i32
    %c0_i32_0 = arith.constant 0 : i32
    %c0_i32_1 = arith.constant 0 : i32
    return %arg0, %arg1, %c0_i32, %c0_i32_0 : i32, i32, i32, i32
  }
  func.func @transform_2(%arg0: i32, %arg1: i32) -> (i32, i32, i32, i32) {
    %c0_i32 = arith.constant 0 : i32
    %c0_i32_0 = arith.constant 0 : i32
    %c0_i32_1 = arith.constant 0 : i32
    return %arg0, %arg1, %c0_i32, %c0_i32_0 : i32, i32, i32, i32
  }
  func.func @transform_3(%arg0: i32, %arg1: i32) -> (i32, i32, i32, i32) {
    %c2_i32 = arith.constant 2 : i32
    %c0_i32 = arith.constant 0 : i32
    %0 = arith.cmpi eq, %c2_i32, %c0_i32 : i32
    %c1_i32 = arith.constant 1 : i32
    %1 = arith.select %0, %c1_i32, %c2_i32 : i32
    %2 = arith.remsi %arg0, %1 : i32
    %c0_i32_0 = arith.constant 0 : i32
    %3 = arith.cmpi ne, %2, %c0_i32_0 : i32
    %c0_i32_1 = arith.constant 0 : i32
    %4 = arith.cmpi slt, %2, %c0_i32_1 : i32
    %c0_i32_2 = arith.constant 0 : i32
    %5 = arith.cmpi slt, %1, %c0_i32_2 : i32
    %6 = arith.xori %4, %5 : i1
    %7 = arith.andi %6, %3 : i1
    %8 = arith.addi %2, %1 : i32
    %9 = arith.select %7, %8, %2 : i32
    %c0_i32_3 = arith.constant 0 : i32
    %c0_i32_4 = arith.constant 0 : i32
    %c0_i32_5 = arith.constant 0 : i32
    return %9, %arg1, %c0_i32_3, %c0_i32_4 : i32, i32, i32, i32
  }
  func.func @transform_4(%arg0: i32, %arg1: i32) -> (i32, i32, i32) {
    %c0_i32 = arith.constant 0 : i32
    %c0_i32_0 = arith.constant 0 : i32
    %c0_i32_1 = arith.constant 0 : i32
    return %arg1, %c0_i32, %c0_i32_0 : i32, i32, i32
  }
  func.func @transform_5(%arg0: i32, %arg1: i32) -> (i32, i32, i32) {
    %c0_i32 = arith.constant 0 : i32
    %c0_i32_0 = arith.constant 0 : i32
    %c0_i32_1 = arith.constant 0 : i32
    return %arg1, %c0_i32, %c0_i32_0 : i32, i32, i32
  }
  func.func @transform_6(%arg0: i32, %arg1: i32) -> (i32, i32, i32, i32) {
    %c0_i32 = arith.constant 0 : i32
    %c0_i32_0 = arith.constant 0 : i32
    %c0_i32_1 = arith.constant 0 : i32
    return %arg0, %arg1, %c0_i32, %c0_i32_0 : i32, i32, i32, i32
  }
  func.func @transform_7(%arg0: i32, %arg1: i32) -> (i32, i32, i32, i32) {
    %c0_i32 = arith.constant 0 : i32
    %c0_i32_0 = arith.constant 0 : i32
    %c0_i32_1 = arith.constant 0 : i32
    return %arg0, %arg1, %c0_i32, %c0_i32_0 : i32, i32, i32, i32
  }
}

module attributes {stable_mosaic.version = 11 : i64} {
  func.func @_be_proj_kernel(%arg0: i32, %arg1: i32, %arg2: i32, %arg3: memref<1x8x32xf32, #tpu.memory_space<vmem>>, %arg4: memref<1x1x32xf32, #tpu.memory_space<vmem>>, %arg5: memref<1x1x96xf32, #tpu.memory_space<vmem>>, %arg6: memref<32x96xf32, #tpu.memory_space<vmem>>, %arg7: memref<1x96xf32, #tpu.memory_space<vmem>>, %arg8: memref<1x8x96xf32, #tpu.memory_space<vmem>>) attributes {dimension_semantics = [#tpu.dimension_semantics<parallel>, #tpu.dimension_semantics<parallel>, #tpu.dimension_semantics<parallel>], iteration_bounds = array<i64: 2, 1, 1>, scalar_prefetch = 0 : i64, scratch_operands = 0 : i64, tpu.core_type = #tpu.core_type<tc>, window_params = [{transform_indices = @transform_0, window_bounds = array<i64: 1, 8, 32>}, {transform_indices = @transform_1, window_bounds = array<i64: 1, 1, 32>}, {transform_indices = @transform_2, window_bounds = array<i64: 1, 1, 96>}, {transform_indices = @transform_3, window_bounds = array<i64: 32, 96>}, {transform_indices = @transform_4, window_bounds = array<i64: 1, 96>}, {transform_indices = @transform_5, window_bounds = array<i64: 1, 8, 96>}]} {
    %c0 = arith.constant 0 : index
    %c0_0 = arith.constant 0 : index
    %c0_1 = arith.constant 0 : index
    %0 = vector.load %arg3[%c0, %c0_0, %c0_1] : memref<1x8x32xf32, #tpu.memory_space<vmem>>, vector<1x8x32xf32>
    %1 = vector.shape_cast %0 : vector<1x8x32xf32> to vector<8x32xf32>
    %c0_2 = arith.constant 0 : index
    %c0_3 = arith.constant 0 : index
    %c0_4 = arith.constant 0 : index
    %2 = vector.load %arg4[%c0_2, %c0_3, %c0_4] : memref<1x1x32xf32, #tpu.memory_space<vmem>>, vector<1x1x32xf32>
    %3 = vector.shape_cast %2 : vector<1x1x32xf32> to vector<1x32xf32>
    %4 = vector.broadcast %3 : vector<1x32xf32> to vector<8x32xf32>
    %5 = arith.mulf %1, %4 : vector<8x32xf32>
    %c0_5 = arith.constant 0 : index
    %c0_6 = arith.constant 0 : index
    %6 = vector.load %arg6[%c0_5, %c0_6] : memref<32x96xf32, #tpu.memory_space<vmem>>, vector<32x96xf32>
    %cst = arith.constant dense<0.000000e+00> : vector<8x96xf32>
    %7 = tpu.matmul %5, %6, %cst {dimension_numbers = #tpu.dot_dimension_numbers<[1], [0], [0], [1], [0, 0, 1, 1], [], []>} : vector<8x32xf32>, vector<32x96xf32>, vector<8x96xf32> -> vector<8x96xf32>
    %c0_7 = arith.constant 0 : index
    %c0_8 = arith.constant 0 : index
    %c0_9 = arith.constant 0 : index
    %8 = vector.load %arg5[%c0_7, %c0_8, %c0_9] : memref<1x1x96xf32, #tpu.memory_space<vmem>>, vector<1x1x96xf32>
    %9 = vector.shape_cast %8 : vector<1x1x96xf32> to vector<1x96xf32>
    %10 = vector.broadcast %9 : vector<1x96xf32> to vector<8x96xf32>
    %11 = arith.mulf %7, %10 : vector<8x96xf32>
    %c0_10 = arith.constant 0 : index
    %c0_11 = arith.constant 0 : index
    %12 = vector.load %arg7[%c0_10, %c0_11] : memref<1x96xf32, #tpu.memory_space<vmem>>, vector<1x96xf32>
    %13 = vector.broadcast %12 : vector<1x96xf32> to vector<8x96xf32>
    %14 = arith.addf %11, %13 : vector<8x96xf32>
    %c0_12 = arith.constant 0 : index
    %c0_13 = arith.constant 0 : index
    %c0_14 = arith.constant 0 : index
    %15 = vector.load %arg8[%c0_12, %c0_13, %c0_14] : memref<1x8x96xf32, #tpu.memory_space<vmem>>, vector<1x8x96xf32>
    %16 = vector.shape_cast %15 : vector<1x8x96xf32> to vector<8x96xf32>
    %17 = vector.shape_cast %14 : vector<8x96xf32> to vector<1x8x96xf32>
    tpu.vector_store %arg8[%c0_12, %c0_13, %c0_14], %17 {strides = array<i32>} : memref<1x8x96xf32, #tpu.memory_space<vmem>>, vector<1x8x96xf32>,
    return
  }
  func.func @transform_0(%arg0: i32, %arg1: i32, %arg2: i32) -> (i32, i32, i32) {
    %c0_i32 = arith.constant 0 : i32
    %c0_i32_0 = arith.constant 0 : i32
    return %arg0, %arg1, %c0_i32 : i32, i32, i32
  }
  func.func @transform_1(%arg0: i32, %arg1: i32, %arg2: i32) -> (i32, i32, i32) {
    %c0_i32 = arith.constant 0 : i32
    %c0_i32_0 = arith.constant 0 : i32
    %c0_i32_1 = arith.constant 0 : i32
    return %arg0, %c0_i32, %c0_i32_0 : i32, i32, i32
  }
  func.func @transform_2(%arg0: i32, %arg1: i32, %arg2: i32) -> (i32, i32, i32) {
    %c0_i32 = arith.constant 0 : i32
    %c0_i32_0 = arith.constant 0 : i32
    return %arg0, %c0_i32, %arg2 : i32, i32, i32
  }
  func.func @transform_3(%arg0: i32, %arg1: i32, %arg2: i32) -> (i32, i32) {
    %c0_i32 = arith.constant 0 : i32
    %c0_i32_0 = arith.constant 0 : i32
    return %c0_i32, %arg2 : i32, i32
  }
  func.func @transform_4(%arg0: i32, %arg1: i32, %arg2: i32) -> (i32, i32) {
    %c0_i32 = arith.constant 0 : i32
    %c0_i32_0 = arith.constant 0 : i32
    return %c0_i32, %arg2 : i32, i32
  }
  func.func @transform_5(%arg0: i32, %arg1: i32, %arg2: i32) -> (i32, i32, i32) {
    %c0_i32 = arith.constant 0 : i32
    return %arg0, %arg1, %arg2 : i32, i32, i32
  }
}

</mosaic_0001>

<llo_original>
// kernel: be_relative_attn_forward.5
$region0: #{be_relative_attn_forward.5}
  #allocation0 [shape = 'u32[]', space=smem, size = 0x4, offset = 0x4, fixed_abs, tag = 'smem constant byte address 0x4 - core index']
  #allocation1 [shape = 'u32[72,128]{1,0:T(1,128)}', space=vmem, size = 0x9000, scoped, tag = 'internal scratch']
  %s0 = inlined_call_operand.vmem [shape: f32[2,8,32], index: 0, kind: input, shape index: {}]
  %s1 = inlined_call_operand.vmem [shape: f32[2,1,32], index: 1, kind: input, shape index: {}]
  %s2 = inlined_call_operand.vmem [shape: f32[2,1,32], index: 2, kind: input, shape index: {}]
  %s3 = inlined_call_operand.vmem [shape: f32[32,32], index: 3, kind: input, shape index: {}]
  %s4 = inlined_call_operand.vmem [shape: f32[1,32], index: 4, kind: input, shape index: {}]
  %s5 = inlined_call_operand.vmem [shape: f32[2,8,32], index: 5, kind: output, shape index: {}]
  %s6 = sld [smem:[#allocation0]]
  $region53: #{be_relative_attn_forward.5} parent=0
    _
  %s8 = ssub.s32 1, %s6
  %s9 = scalar_select 0, %s8, %s6
  loop: start=0, step=1, limit=4
  $region2: #{be_relative_attn_forward.5} parent=0 // loop_pre_header
    _
  $region3: #{be_relative_attn_forward.5} parent=0 // loop_header
    %s11 = sphi 0, %s15
    %p12 = scmp.ge.s32.totalorder %s11, 4
    %s18 = sphi 0, %s37
    %s19 = sphi 0, %s33
    %s20 = sphi 0, %s29
    %s21 = sphi 0, %s18
    %s22 = sphi 0, %s19
    %s23 = sphi 0, %s20
    %s24 = sphi 0, %s21
    %s25 = sphi 0, %s22
    %s26 = sphi 0, %s23
    %s42 = sphi 0, %s44
    %s45 = sphi 0, %s42
    %s46 = sphi 0, %s45
    %s62 = sphi 0, %s46
    %s68 = sphi 0, %s70
    %s71 = sphi 0, %s68
    %s72 = sphi 0, %s71
    %s88 = sphi 0, %s72
    %s96 = sphi 0, %s98
    %s99 = sphi 0, %s96
    %s100 = sphi 0, %s99
    %s116 = sphi 0, %s100
    %s122 = sphi 0, %s124
    %s125 = sphi 0, %s122
    %s126 = sphi 0, %s125
    %s142 = sphi 0, %s126
    %s148 = sphi 0, %s150
    %s151 = sphi 0, %s148
    %s152 = sphi 0, %s151
    %s168 = sphi 0, %s152
    %s178 = sphi 0, %s180
    %s181 = sphi 0, %s178
    %s182 = sphi 0, %s181
    %s198 = sphi 0, %s182
  $region4: #{be_relative_attn_forward.5} parent=0 // loop_header_branch
    %14 = sbr.rel (%p12) target = $region8
  $region5: #{be_relative_attn_forward.5} parent=0 // loop_body
    %s16 = ssub.s32 %s11, 1
    %s17 = ssub.s32 %s11, 2
    %s27 = sadd.s32 1, %s20
    %p28 = scmp.ge.s32.totalorder %s27, 1
    %s29 = scalar_select %p28, 0, %s27
    %s30 = sadd.s32 1, %s19
    %s31 = scalar_select %p28, %s30, %s19
    %p32 = scmp.ge.s32.totalorder %s31, 1
    %s33 = scalar_select %p32, 0, %s31
    %s34 = sadd.s32 1, %s18
    %s35 = scalar_select %p32, %s34, %s18
    %p36 = scmp.ge.s32.totalorder %s35, 2
    %s37 = scalar_select %p36, 0, %s35
    %s38 = ssub.s32 %s18, %s37
    %s39 = ssub.s32 %s19, %s33
    %s40 = sor.u32 %s38, %s39
    %p41 = scmp.eq.s32.totalorder %s40, 0
    %s43 = sadd.s32 %s42, 1
    %s44 = scalar_select %p41, %s42, %s43
    %p47 = pneg %p41
    %p48 = scmp.eq.s32.totalorder %s11, 1
    %p49 = por %p47, %p48
    %p50 = scmp.ne.s32.totalorder %s42, %s45
    %p51 = scmp.eq.s32.totalorder %s11, 0
    %p52 = por %p50, %p51
    %p53 = scmp.ne.s32.totalorder %s42, %s45
    %p54 = scmp.eq.s32.totalorder %s16, 1
    %p55 = por %p53, %p54
    %p56 = scmp.ne.s32.totalorder %s45, %s46
    %p57 = scmp.eq.s32.totalorder %s16, 0
    %p58 = por %p56, %p57
    %p59 = scmp.ne.s32.totalorder %s45, %s46
    %p60 = scmp.eq.s32.totalorder %s17, 1
    %p61 = por %p59, %p60
    %p63 = scmp.ne.s32.totalorder %s46, %s62
    %p64 = scmp.eq.s32.totalorder %s17, 0
    %p65 = por %p63, %p64
    %s66 = ssub.s32 %s18, %s37
    %p67 = scmp.eq.s32.totalorder %s66, 0
    %s69 = sadd.s32 %s68, 1
    %s70 = scalar_select %p67, %s68, %s69
    %p73 = pneg %p67
    %p74 = scmp.eq.s32.totalorder %s11, 1
    %p75 = por %p73, %p74
    %p76 = scmp.ne.s32.totalorder %s68, %s71
    %p77 = scmp.eq.s32.totalorder %s11, 0
    %p78 = por %p76, %p77
    %p79 = scmp.ne.s32.totalorder %s68, %s71
    %p80 = scmp.eq.s32.totalorder %s16, 1
    %p81 = por %p79, %p80
    %p82 = scmp.ne.s32.totalorder %s71, %s72
    %p83 = scmp.eq.s32.totalorder %s16, 0
    %p84 = por %p82, %p83
    %p85 = scmp.ne.s32.totalorder %s71, %s72
    %p86 = scmp.eq.s32.totalorder %s17, 1
    %p87 = por %p85, %p86
    %p89 = scmp.ne.s32.totalorder %s72, %s88
    %p90 = scmp.eq.s32.totalorder %s17, 0
    %p91 = por %p89, %p90
    %s92 = ssub.s32 %s18, %s37
    %s93 = ssub.s32 %s20, %s29
    %s94 = sor.u32 %s92, %s93
    %p95 = scmp.eq.s32.totalorder %s94, 0
    %s97 = sadd.s32 %s96, 1
    %s98 = scalar_select %p95, %s96, %s97
    %p101 = pneg %p95
    %p102 = scmp.eq.s32.totalorder %s11, 1
    %p103 = por %p101, %p102
    %p104 = scmp.ne.s32.totalorder %s96, %s99
    %p105 = scmp.eq.s32.totalorder %s11, 0
    %p106 = por %p104, %p105
    %p107 = scmp.ne.s32.totalorder %s96, %s99
    %p108 = scmp.eq.s32.totalorder %s16, 1
    %p109 = por %p107, %p108
    %p110 = scmp.ne.s32.totalorder %s99, %s100
    %p111 = scmp.eq.s32.totalorder %s16, 0
    %p112 = por %p110, %p111
    %p113 = scmp.ne.s32.totalorder %s99, %s100
    %p114 = scmp.eq.s32.totalorder %s17, 1
    %p115 = por %p113, %p114
    %p117 = scmp.ne.s32.totalorder %s100, %s116
    %p118 = scmp.eq.s32.totalorder %s17, 0
    %p119 = por %p117, %p118
    %s120 = ssub.s32 %s20, %s29
    %p121 = scmp.eq.s32.totalorder %s120, 0
    %s123 = sadd.s32 %s122, 1
    %s124 = scalar_select %p121, %s122, %s123
    %p127 = pneg %p121
    %p128 = scmp.eq.s32.totalorder %s11, 1
    %p129 = por %p127, %p128
    %p130 = scmp.ne.s32.totalorder %s122, %s125
    %p131 = scmp.eq.s32.totalorder %s11, 0
    %p132 = por %p130, %p131
    %p133 = scmp.ne.s32.totalorder %s122, %s125
    %p134 = scmp.eq.s32.totalorder %s16, 1
    %p135 = por %p133, %p134
    %p136 = scmp.ne.s32.totalorder %s125, %s126
    %p137 = scmp.eq.s32.totalorder %s16, 0
    %p138 = por %p136, %p137
    %p139 = scmp.ne.s32.totalorder %s125, %s126
    %p140 = scmp.eq.s32.totalorder %s17, 1
    %p141 = por %p139, %p140
    %p143 = scmp.ne.s32.totalorder %s126, %s142
    %p144 = scmp.eq.s32.totalorder %s17, 0
    %p145 = por %p143, %p144
    %s146 = ssub.s32 %s20, %s29
    %p147 = scmp.eq.s32.totalorder %s146, 0
    %s149 = sadd.s32 %s148, 1
    %s150 = scalar_select %p147, %s148, %s149
    %p153 = pneg %p147
    %p154 = scmp.eq.s32.totalorder %s11, 1
    %p155 = por %p153, %p154
    %p156 = scmp.ne.s32.totalorder %s148, %s151
    %p157 = scmp.eq.s32.totalorder %s11, 0
    %p158 = por %p156, %p157
    %p159 = scmp.ne.s32.totalorder %s148, %s151
    %p160 = scmp.eq.s32.totalorder %s16, 1
    %p161 = por %p159, %p160
    %p162 = scmp.ne.s32.totalorder %s151, %s152
    %p163 = scmp.eq.s32.totalorder %s16, 0
    %p164 = por %p162, %p163
    %p165 = scmp.ne.s32.totalorder %s151, %s152
    %p166 = scmp.eq.s32.totalorder %s17, 1
    %p167 = por %p165, %p166
    %p169 = scmp.ne.s32.totalorder %s152, %s168
    %p170 = scmp.eq.s32.totalorder %s17, 0
    %p171 = por %p169, %p170
    %s172 = ssub.s32 %s18, %s37
    %s173 = ssub.s32 %s19, %s33
    %s174 = sor.u32 %s172, %s173
    %s175 = ssub.s32 %s20, %s29
    %s176 = sor.u32 %s174, %s175
    %p177 = scmp.eq.s32.totalorder %s176, 0
    %s179 = sadd.s32 %s178, 1
    %s180 = scalar_select %p177, %s178, %s179
    %p183 = pneg %p177
    %p184 = scmp.eq.s32.totalorder %s11, 1
    %p185 = por %p183, %p184
    %p186 = scmp.ne.s32.totalorder %s178, %s181
    %p187 = scmp.eq.s32.totalorder %s11, 0
    %p188 = por %p186, %p187
    %p189 = scmp.ne.s32.totalorder %s178, %s181
    %p190 = scmp.eq.s32.totalorder %s16, 1
    %p191 = por %p189, %p190
    %p192 = scmp.ne.s32.totalorder %s181, %s182
    %p193 = scmp.eq.s32.totalorder %s16, 0
    %p194 = por %p192, %p193
    %p195 = scmp.ne.s32.totalorder %s181, %s182
    %p196 = scmp.eq.s32.totalorder %s17, 1
    %p197 = por %p195, %p196
    %p199 = scmp.ne.s32.totalorder %s182, %s198
    %p200 = scmp.eq.s32.totalorder %s17, 0
    %p201 = por %p199, %p200
    %p202 = scmp.le.s32.totalorder 1, %s11
    %p203 = scmp.lt.s32.totalorder %s11, 3
    %p204 = pnand %p202, %p203
    %p205 = pneg %p204
    // Predicated region
    $region9: #{be_relative_attn_forward.5} parent=5 // pred_check
      _
    $region10: #{be_relative_attn_forward.5} parent=5 // pred_check_branch
      %207 = sbr.rel (%p204) target = $region12
    $region11: #{be_relative_attn_forward.5} parent=5 // pred_region
      %s208 = ssub.s32 %s11, 1
      // Predicated region
      $region13: #{be_relative_attn_forward.5} parent=11 // pred_check
        %p209 = pneg %p138
      $region14: #{be_relative_attn_forward.5} parent=11 // pred_check_branch
        %211 = sbr.rel (%p209) target = $region16
      $region15: #{be_relative_attn_forward.5} parent=11 // pred_region
        %p212 = scmp.lt.s32.totalorder %s23, 0
        %s213 = scalar_select %p212, %s23, 0
        %s214 = smul.addr %s213, 8
        %s215 = scalar_lea.vmem %s3, %s214
      $region16: #{be_relative_attn_forward.5} parent=11 // pred_fallthru
        _
      // Predicated region
      $region17: #{be_relative_attn_forward.5} parent=11 // pred_check
        %p216 = pneg %p164
      $region18: #{be_relative_attn_forward.5} parent=11 // pred_check_branch
        %218 = sbr.rel (%p216) target = $region20
      $region19: #{be_relative_attn_forward.5} parent=11 // pred_region
        %p219 = scmp.lt.s32.totalorder %s23, 0
        %s220 = scalar_select %p219, %s23, 0
        %s221 = scalar_lea.vmem %s4, %s220
      $region20: #{be_relative_attn_forward.5} parent=11 // pred_fallthru
        _
    $region12: #{be_relative_attn_forward.5} parent=5 // pred_fallthru
      _
    %p222 = scmp.lt.s32.totalorder %s11, 2
    // Predicated region
    $region21: #{be_relative_attn_forward.5} parent=5 // pred_check
      %p223 = pneg %p222
    $region22: #{be_relative_attn_forward.5} parent=5 // pred_check_branch
      %225 = sbr.rel (%p223) target = $region24
    $region23: #{be_relative_attn_forward.5} parent=5 // pred_region
      // Predicated region
      $region25: #{be_relative_attn_forward.5} parent=23 // pred_check
        %p226 = pneg %p52
      $region26: #{be_relative_attn_forward.5} parent=23 // pred_check_branch
        %228 = sbr.rel (%p226) target = $region28
      $region27: #{be_relative_attn_forward.5} parent=23 // pred_region
        %p229 = scmp.lt.s32.totalorder %s18, 1
        %s230 = scalar_select %p229, %s18, 1
        %p231 = scmp.lt.s32.totalorder %s19, 0
        %s232 = scalar_select %p231, %s19, 0
        %s233 = sadd.s32 %s232, %s230
        %s234 = smul.addr %s233, 8
        %s235 = scalar_lea.vmem %s0, %s234
      $region28: #{be_relative_attn_forward.5} parent=23 // pred_fallthru
        _
      // Predicated region
      $region29: #{be_relative_attn_forward.5} parent=23 // pred_check
        %p236 = pneg %p78
      $region30: #{be_relative_attn_forward.5} parent=23 // pred_check_branch
        %238 = sbr.rel (%p236) target = $region32
      $region31: #{be_relative_attn_forward.5} parent=23 // pred_region
        %p239 = scmp.lt.s32.totalorder %s18, 1
        %s240 = scalar_select %p239, %s18, 1
        %s241 = scalar_lea.vmem %s1, %s240
      $region32: #{be_relative_attn_forward.5} parent=23 // pred_fallthru
        _
      // Predicated region
      $region33: #{be_relative_attn_forward.5} parent=23 // pred_check
        %p242 = pneg %p106
      $region34: #{be_relative_attn_forward.5} parent=23 // pred_check_branch
        %244 = sbr.rel (%p242) target = $region36
      $region35: #{be_relative_attn_forward.5} parent=23 // pred_region
        %p245 = scmp.lt.s32.totalorder %s18, 1
        %s246 = scalar_select %p245, %s18, 1
        %p247 = scmp.lt.s32.totalorder %s20, 0
        %s248 = scalar_select %p247, %s20, 0
        %s249 = sadd.s32 %s248, %s246
        %s250 = scalar_lea.vmem %s2, %s249
      $region36: #{be_relative_attn_forward.5} parent=23 // pred_fallthru
        _
    $region24: #{be_relative_attn_forward.5} parent=5 // pred_fallthru
      _
    %p251 = scmp.le.s32.totalorder 1, %s11
    %p252 = scmp.lt.s32.totalorder %s11, 3
    %p253 = pnand %p251, %p252
    %p254 = pneg %p253
    // Predicated region
    $region37: #{be_relative_attn_forward.5} parent=5 // pred_check
      _
    $region38: #{be_relative_attn_forward.5} parent=5 // pred_check_branch
      %256 = sbr.rel (%p253) target = $region40
    $region39: #{be_relative_attn_forward.5} parent=5 // pred_region
      %s257 = ssub.s32 %s11, 1
      %p258 = scmp.lt.s32.totalorder %s21, 1
      %s259 = scalar_select %p258, %s21, 1
      %p260 = scmp.lt.s32.totalorder %s22, 0
      %s261 = scalar_select %p260, %s22, 0
      %s262 = sadd.s32 %s261, %s259
      %s263 = smul.addr %s262, 8
      %s264 = scalar_lea.vmem %s0, %s263
      %p265 = pneg %p58
      %p266 = pneg %p55
      %p267 = scmp.lt.s32.totalorder %s21, 1
      %s268 = scalar_select %p267, %s21, 1
      %s269 = scalar_lea.vmem %s1, %s268
      %p270 = pneg %p84
      %p271 = pneg %p81
      %p272 = scmp.lt.s32.totalorder %s21, 1
      %s273 = scalar_select %p272, %s21, 1
      %p274 = scmp.lt.s32.totalorder %s23, 0
      %s275 = scalar_select %p274, %s23, 0
      %s276 = sadd.s32 %s275, %s273
      %s277 = scalar_lea.vmem %s2, %s276
      %p278 = pneg %p112
      %p279 = pneg %p109
      %p280 = scmp.lt.s32.totalorder %s23, 0
      %s281 = scalar_select %p280, %s23, 0
      %s282 = smul.addr %s281, 8
      %s283 = scalar_lea.vmem %s3, %s282
      %p284 = pneg %p138
      %p285 = pneg %p135
      %p286 = scmp.lt.s32.totalorder %s23, 0
      %s287 = scalar_select %p286, %s23, 0
      %s288 = scalar_lea.vmem %s4, %s287
      %p289 = pneg %p164
      %p290 = pneg %p161
      %p291 = pneg %p194
      %p292 = pneg %p191
      %p293 = scmp.lt.s32.totalorder %s21, 1
      %s294 = scalar_select %p293, %s21, 1
      %p295 = scmp.lt.s32.totalorder %s22, 0
      %s296 = scalar_select %p295, %s22, 0
      %p297 = scmp.lt.s32.totalorder %s23, 0
      %s298 = scalar_select %p297, %s23, 0
      %s299 = sadd.s32 %s298, %s296
      %s300 = sadd.s32 %s299, %s294
      %s301 = smul.addr %s300, 8
      %s302 = scalar_lea.vmem %s5, %s301
      %p303 = scmp.lt.s32.totalorder %s21, 1
      %s304 = scalar_select %p303, %s21, 1
      %p305 = scmp.lt.s32.totalorder %s22, 0
      %s306 = scalar_select %p305, %s22, 0
      %s307 = sadd.s32 %s306, %s304
      %s308 = smul.addr %s307, 8
      %s309 = scalar_lea.vmem %s0, %s308
      %p310 = scmp.lt.s32.totalorder %s21, 1
      %s311 = scalar_select %p310, %s21, 1
      %s312 = scalar_lea.vmem %s1, %s311
      %p313 = scmp.lt.s32.totalorder %s21, 1
      %s314 = scalar_select %p313, %s21, 1
      %p315 = scmp.lt.s32.totalorder %s23, 0
      %s316 = scalar_select %p315, %s23, 0
      %s317 = sadd.s32 %s316, %s314
      %s318 = scalar_lea.vmem %s2, %s317
      %p319 = scmp.lt.s32.totalorder %s23, 0
      %s320 = scalar_select %p319, %s23, 0
      %s321 = smul.addr %s320, 8
      %s322 = scalar_lea.vmem %s3, %s321
      %p323 = scmp.lt.s32.totalorder %s23, 0
      %s324 = scalar_select %p323, %s23, 0
      %s325 = scalar_lea.vmem %s4, %s324
      %p326 = scmp.lt.s32.totalorder %s21, 1
      %s327 = scalar_select %p326, %s21, 1
      %p328 = scmp.lt.s32.totalorder %s22, 0
      %s329 = scalar_select %p328, %s22, 0
      %p330 = scmp.lt.s32.totalorder %s23, 0
      %s331 = scalar_select %p330, %s23, 0
      %s332 = sadd.s32 %s331, %s329
      %s333 = sadd.s32 %s332, %s327
      %s334 = smul.addr %s333, 8
      %s335 = scalar_lea.vmem %s5, %s334
      %v336 = vld [vmem:[%s309] sm:$0xff]
      %v337 = vld [vmem:[%s312] sm:$0x1]
      %v339 = vperm.slane %v337, 0
      %v341 = vmul.f32 %v336, %v339
      %v342 = vld [vmem:[%s322] sm:$0xff]
      %v343 = vld [vmem:[%s322 + $0x8] sm:$0xff]
      %v344 = vld [vmem:[%s322 + $0x10] sm:$0xff]
      %v345 = vld [vmem:[%s322 + $0x18] sm:$0xff]
      %vm346 = vcmask 261120
      %v348 = vsel %vm346, %v341, 0
      %350 = vmatpush.msra.mxu0 0.0
      %351 = vmatpush.msra.mxu0 0.0
      %352 = vmatpush.msra.mxu0 0.0
      %353 = vmatpush.msra.mxu0 0.0
      %354 = vmatpush.msra.mxu0 0.0
      %355 = vmatpush.msra.mxu0 0.0
      %356 = vmatpush.msra.mxu0 0.0
      %357 = vmatpush.msra.mxu0 0.0
      %358 = vmatpush.msra.mxu0 0.0
      %359 = vmatpush.msra.mxu0 0.0
      %360 = vmatpush.msra.mxu0 0.0
      %361 = vmatpush.msra.mxu0 0.0
      %362 = vmatpush.msra.mxu0 %v345
      %363 = vmatpush.msra.mxu0 %v344
      %364 = vmatpush.msra.mxu0 %v343
      %365 = vmatpush.msra.mxu0 %v342
      %366 = vmatmul.f32.gmra.mxu0 %v348
      %v367 = vpop.f32.mrf.mxu0
      %v368 = vadd.f32 0.0, %v367
      %369 = vdwg.mxu0
      %v370 = vld [vmem:[%s318] sm:$0x1]
      %v372 = vperm.slane %v370, 0
      %v374 = vmul.f32 %v368, %v372
      %v375 = vld [vmem:[%s325] sm:$0x1]
      %v377 = vperm.slane %v375, 0
      %v379 = vadd.f32 %v374, %v377
      %380 = vst.msk [vmem:[%s335] sm:$0xff] %vm346, %v379
      %p381 = scmp.lt.s32.totalorder %s21, 1
      %s382 = scalar_select %p381, %s21, 1
      %p383 = scmp.lt.s32.totalorder %s22, 0
      %s384 = scalar_select %p383, %s22, 0
      %p385 = scmp.lt.s32.totalorder %s23, 0
      %s386 = scalar_select %p385, %s23, 0
      %s387 = sadd.s32 %s386, %s384
      %s388 = sadd.s32 %s387, %s382
      %s389 = smul.addr %s388, 8
      %s390 = scalar_lea.vmem %s5, %s389
      // Predicated region
      $region41: #{be_relative_attn_forward.5} parent=39 // pred_check
        %p391 = pneg %p191
      $region42: #{be_relative_attn_forward.5} parent=39 // pred_check_branch
        %393 = sbr.rel (%p391) target = $region44
      $region43: #{be_relative_attn_forward.5} parent=39 // pred_region
        _
      $region44: #{be_relative_attn_forward.5} parent=39 // pred_fallthru
        _
    $region40: #{be_relative_attn_forward.5} parent=5 // pred_fallthru
      _
    %p394 = scmp.le.s32.totalorder 2, %s11
    // Predicated region
    $region45: #{be_relative_attn_forward.5} parent=5 // pred_check
      %p395 = pneg %p394
    $region46: #{be_relative_attn_forward.5} parent=5 // pred_check_branch
      %397 = sbr.rel (%p395) target = $region48
    $region47: #{be_relative_attn_forward.5} parent=5 // pred_region
      %s398 = ssub.s32 %s11, 2
      // Predicated region
      $region49: #{be_relative_attn_forward.5} parent=47 // pred_check
        %p399 = pneg %p197
      $region50: #{be_relative_attn_forward.5} parent=47 // pred_check_branch
        %401 = sbr.rel (%p399) target = $region52
      $region51: #{be_relative_attn_forward.5} parent=47 // pred_region
        %p402 = scmp.lt.s32.totalorder %s24, 1
        %s403 = scalar_select %p402, %s24, 1
        %p404 = scmp.lt.s32.totalorder %s25, 0
        %s405 = scalar_select %p404, %s25, 0
        %p406 = scmp.lt.s32.totalorder %s26, 0
        %s407 = scalar_select %p406, %s26, 0
        %s408 = sadd.s32 %s407, %s405
        %s409 = sadd.s32 %s408, %s403
        %s410 = smul.addr %s409, 8
        %s411 = scalar_lea.vmem %s5, %s410
      $region52: #{be_relative_attn_forward.5} parent=47 // pred_fallthru
        _
    $region48: #{be_relative_attn_forward.5} parent=5 // pred_fallthru
      _
  $region6: #{be_relative_attn_forward.5} parent=0 // loop_footer
    %s15 = sadd.s32 1, %s11
  $region7: #{be_relative_attn_forward.5} parent=0 // loop_footer_branch
    %10 = sbr.rel target = $region3
  $region8: #{be_relative_attn_forward.5} parent=0 // loop_exit
    _

// kernel: be_relative_attn_forward.4
$region0: #{be_relative_attn_forward.4}
  #allocation0 [shape = 'u32[]', space=smem, size = 0x4, offset = 0x4, fixed_abs, tag = 'smem constant byte address 0x4 - core index']
  #allocation1 [shape = 'u32[72,128]{1,0:T(1,128)}', space=vmem, size = 0x9000, scoped, tag = 'internal scratch']
  %s0 = inlined_call_operand.vmem [shape: f32[2,8,32], index: 0, kind: input, shape index: {}]
  %s1 = inlined_call_operand.vmem [shape: f32[2,1,32], index: 1, kind: input, shape index: {}]
  %s2 = inlined_call_operand.vmem [shape: f32[2,1,96], index: 2, kind: input, shape index: {}]
  %s3 = inlined_call_operand.vmem [shape: f32[32,96], index: 3, kind: input, shape index: {}]
  %s4 = inlined_call_operand.vmem [shape: f32[1,96], index: 4, kind: input, shape index: {}]
  %s5 = inlined_call_operand.vmem [shape: f32[2,8,96], index: 5, kind: output, shape index: {}]
  %s6 = sld [smem:[#allocation0]]
  $region53: #{be_relative_attn_forward.4} parent=0
    _
  %s8 = ssub.s32 1, %s6
  %s9 = scalar_select 0, %s8, %s6
  loop: start=0, step=1, limit=4
  $region2: #{be_relative_attn_forward.4} parent=0 // loop_pre_header
    _
  $region3: #{be_relative_attn_forward.4} parent=0 // loop_header
    %s11 = sphi 0, %s15
    %p12 = scmp.ge.s32.totalorder %s11, 4
    %s18 = sphi 0, %s37
    %s19 = sphi 0, %s33
    %s20 = sphi 0, %s29
    %s21 = sphi 0, %s18
    %s22 = sphi 0, %s19
    %s23 = sphi 0, %s20
    %s24 = sphi 0, %s21
    %s25 = sphi 0, %s22
    %s26 = sphi 0, %s23
    %s42 = sphi 0, %s44
    %s45 = sphi 0, %s42
    %s46 = sphi 0, %s45
    %s62 = sphi 0, %s46
    %s68 = sphi 0, %s70
    %s71 = sphi 0, %s68
    %s72 = sphi 0, %s71
    %s88 = sphi 0, %s72
    %s96 = sphi 0, %s98
    %s99 = sphi 0, %s96
    %s100 = sphi 0, %s99
    %s116 = sphi 0, %s100
    %s122 = sphi 0, %s124
    %s125 = sphi 0, %s122
    %s126 = sphi 0, %s125
    %s142 = sphi 0, %s126
    %s148 = sphi 0, %s150
    %s151 = sphi 0, %s148
    %s152 = sphi 0, %s151
    %s168 = sphi 0, %s152
    %s178 = sphi 0, %s180
    %s181 = sphi 0, %s178
    %s182 = sphi 0, %s181
    %s198 = sphi 0, %s182
  $region4: #{be_relative_attn_forward.4} parent=0 // loop_header_branch
    %14 = sbr.rel (%p12) target = $region8
  $region5: #{be_relative_attn_forward.4} parent=0 // loop_body
    %s16 = ssub.s32 %s11, 1
    %s17 = ssub.s32 %s11, 2
    %s27 = sadd.s32 1, %s20
    %p28 = scmp.ge.s32.totalorder %s27, 1
    %s29 = scalar_select %p28, 0, %s27
    %s30 = sadd.s32 1, %s19
    %s31 = scalar_select %p28, %s30, %s19
    %p32 = scmp.ge.s32.totalorder %s31, 1
    %s33 = scalar_select %p32, 0, %s31
    %s34 = sadd.s32 1, %s18
    %s35 = scalar_select %p32, %s34, %s18
    %p36 = scmp.ge.s32.totalorder %s35, 2
    %s37 = scalar_select %p36, 0, %s35
    %s38 = ssub.s32 %s18, %s37
    %s39 = ssub.s32 %s19, %s33
    %s40 = sor.u32 %s38, %s39
    %p41 = scmp.eq.s32.totalorder %s40, 0
    %s43 = sadd.s32 %s42, 1
    %s44 = scalar_select %p41, %s42, %s43
    %p47 = pneg %p41
    %p48 = scmp.eq.s32.totalorder %s11, 1
    %p49 = por %p47, %p48
    %p50 = scmp.ne.s32.totalorder %s42, %s45
    %p51 = scmp.eq.s32.totalorder %s11, 0
    %p52 = por %p50, %p51
    %p53 = scmp.ne.s32.totalorder %s42, %s45
    %p54 = scmp.eq.s32.totalorder %s16, 1
    %p55 = por %p53, %p54
    %p56 = scmp.ne.s32.totalorder %s45, %s46
    %p57 = scmp.eq.s32.totalorder %s16, 0
    %p58 = por %p56, %p57
    %p59 = scmp.ne.s32.totalorder %s45, %s46
    %p60 = scmp.eq.s32.totalorder %s17, 1
    %p61 = por %p59, %p60
    %p63 = scmp.ne.s32.totalorder %s46, %s62
    %p64 = scmp.eq.s32.totalorder %s17, 0
    %p65 = por %p63, %p64
    %s66 = ssub.s32 %s18, %s37
    %p67 = scmp.eq.s32.totalorder %s66, 0
    %s69 = sadd.s32 %s68, 1
    %s70 = scalar_select %p67, %s68, %s69
    %p73 = pneg %p67
    %p74 = scmp.eq.s32.totalorder %s11, 1
    %p75 = por %p73, %p74
    %p76 = scmp.ne.s32.totalorder %s68, %s71
    %p77 = scmp.eq.s32.totalorder %s11, 0
    %p78 = por %p76, %p77
    %p79 = scmp.ne.s32.totalorder %s68, %s71
    %p80 = scmp.eq.s32.totalorder %s16, 1
    %p81 = por %p79, %p80
    %p82 = scmp.ne.s32.totalorder %s71, %s72
    %p83 = scmp.eq.s32.totalorder %s16, 0
    %p84 = por %p82, %p83
    %p85 = scmp.ne.s32.totalorder %s71, %s72
    %p86 = scmp.eq.s32.totalorder %s17, 1
    %p87 = por %p85, %p86
    %p89 = scmp.ne.s32.totalorder %s72, %s88
    %p90 = scmp.eq.s32.totalorder %s17, 0
    %p91 = por %p89, %p90
    %s92 = ssub.s32 %s18, %s37
    %s93 = ssub.s32 %s20, %s29
    %s94 = sor.u32 %s92, %s93
    %p95 = scmp.eq.s32.totalorder %s94, 0
    %s97 = sadd.s32 %s96, 1
    %s98 = scalar_select %p95, %s96, %s97
    %p101 = pneg %p95
    %p102 = scmp.eq.s32.totalorder %s11, 1
    %p103 = por %p101, %p102
    %p104 = scmp.ne.s32.totalorder %s96, %s99
    %p105 = scmp.eq.s32.totalorder %s11, 0
    %p106 = por %p104, %p105
    %p107 = scmp.ne.s32.totalorder %s96, %s99
    %p108 = scmp.eq.s32.totalorder %s16, 1
    %p109 = por %p107, %p108
    %p110 = scmp.ne.s32.totalorder %s99, %s100
    %p111 = scmp.eq.s32.totalorder %s16, 0
    %p112 = por %p110, %p111
    %p113 = scmp.ne.s32.totalorder %s99, %s100
    %p114 = scmp.eq.s32.totalorder %s17, 1
    %p115 = por %p113, %p114
    %p117 = scmp.ne.s32.totalorder %s100, %s116
    %p118 = scmp.eq.s32.totalorder %s17, 0
    %p119 = por %p117, %p118
    %s120 = ssub.s32 %s20, %s29
    %p121 = scmp.eq.s32.totalorder %s120, 0
    %s123 = sadd.s32 %s122, 1
    %s124 = scalar_select %p121, %s122, %s123
    %p127 = pneg %p121
    %p128 = scmp.eq.s32.totalorder %s11, 1
    %p129 = por %p127, %p128
    %p130 = scmp.ne.s32.totalorder %s122, %s125
    %p131 = scmp.eq.s32.totalorder %s11, 0
    %p132 = por %p130, %p131
    %p133 = scmp.ne.s32.totalorder %s122, %s125
    %p134 = scmp.eq.s32.totalorder %s16, 1
    %p135 = por %p133, %p134
    %p136 = scmp.ne.s32.totalorder %s125, %s126
    %p137 = scmp.eq.s32.totalorder %s16, 0
    %p138 = por %p136, %p137
    %p139 = scmp.ne.s32.totalorder %s125, %s126
    %p140 = scmp.eq.s32.totalorder %s17, 1
    %p141 = por %p139, %p140
    %p143 = scmp.ne.s32.totalorder %s126, %s142
    %p144 = scmp.eq.s32.totalorder %s17, 0
    %p145 = por %p143, %p144
    %s146 = ssub.s32 %s20, %s29
    %p147 = scmp.eq.s32.totalorder %s146, 0
    %s149 = sadd.s32 %s148, 1
    %s150 = scalar_select %p147, %s148, %s149
    %p153 = pneg %p147
    %p154 = scmp.eq.s32.totalorder %s11, 1
    %p155 = por %p153, %p154
    %p156 = scmp.ne.s32.totalorder %s148, %s151
    %p157 = scmp.eq.s32.totalorder %s11, 0
    %p158 = por %p156, %p157
    %p159 = scmp.ne.s32.totalorder %s148, %s151
    %p160 = scmp.eq.s32.totalorder %s16, 1
    %p161 = por %p159, %p160
    %p162 = scmp.ne.s32.totalorder %s151, %s152
    %p163 = scmp.eq.s32.totalorder %s16, 0
    %p164 = por %p162, %p163
    %p165 = scmp.ne.s32.totalorder %s151, %s152
    %p166 = scmp.eq.s32.totalorder %s17, 1
    %p167 = por %p165, %p166
    %p169 = scmp.ne.s32.totalorder %s152, %s168
    %p170 = scmp.eq.s32.totalorder %s17, 0
    %p171 = por %p169, %p170
    %s172 = ssub.s32 %s18, %s37
    %s173 = ssub.s32 %s19, %s33
    %s174 = sor.u32 %s172, %s173
    %s175 = ssub.s32 %s20, %s29
    %s176 = sor.u32 %s174, %s175
    %p177 = scmp.eq.s32.totalorder %s176, 0
    %s179 = sadd.s32 %s178, 1
    %s180 = scalar_select %p177, %s178, %s179
    %p183 = pneg %p177
    %p184 = scmp.eq.s32.totalorder %s11, 1
    %p185 = por %p183, %p184
    %p186 = scmp.ne.s32.totalorder %s178, %s181
    %p187 = scmp.eq.s32.totalorder %s11, 0
    %p188 = por %p186, %p187
    %p189 = scmp.ne.s32.totalorder %s178, %s181
    %p190 = scmp.eq.s32.totalorder %s16, 1
    %p191 = por %p189, %p190
    %p192 = scmp.ne.s32.totalorder %s181, %s182
    %p193 = scmp.eq.s32.totalorder %s16, 0
    %p194 = por %p192, %p193
    %p195 = scmp.ne.s32.totalorder %s181, %s182
    %p196 = scmp.eq.s32.totalorder %s17, 1
    %p197 = por %p195, %p196
    %p199 = scmp.ne.s32.totalorder %s182, %s198
    %p200 = scmp.eq.s32.totalorder %s17, 0
    %p201 = por %p199, %p200
    %p202 = scmp.le.s32.totalorder 1, %s11
    %p203 = scmp.lt.s32.totalorder %s11, 3
    %p204 = pnand %p202, %p203
    %p205 = pneg %p204
    // Predicated region
    $region9: #{be_relative_attn_forward.4} parent=5 // pred_check
      _
    $region10: #{be_relative_attn_forward.4} parent=5 // pred_check_branch
      %207 = sbr.rel (%p204) target = $region12
    $region11: #{be_relative_attn_forward.4} parent=5 // pred_region
      %s208 = ssub.s32 %s11, 1
      // Predicated region
      $region13: #{be_relative_attn_forward.4} parent=11 // pred_check
        %p209 = pneg %p138
      $region14: #{be_relative_attn_forward.4} parent=11 // pred_check_branch
        %211 = sbr.rel (%p209) target = $region16
      $region15: #{be_relative_attn_forward.4} parent=11 // pred_region
        %p212 = scmp.lt.s32.totalorder %s23, 0
        %s213 = scalar_select %p212, %s23, 0
        %s214 = smul.addr %s213, 8
        %s215 = scalar_lea.vmem %s3, %s214
      $region16: #{be_relative_attn_forward.4} parent=11 // pred_fallthru
        _
      // Predicated region
      $region17: #{be_relative_attn_forward.4} parent=11 // pred_check
        %p216 = pneg %p164
      $region18: #{be_relative_attn_forward.4} parent=11 // pred_check_branch
        %218 = sbr.rel (%p216) target = $region20
      $region19: #{be_relative_attn_forward.4} parent=11 // pred_region
        %p219 = scmp.lt.s32.totalorder %s23, 0
        %s220 = scalar_select %p219, %s23, 0
        %s221 = scalar_lea.vmem %s4, %s220
      $region20: #{be_relative_attn_forward.4} parent=11 // pred_fallthru
        _
    $region12: #{be_relative_attn_forward.4} parent=5 // pred_fallthru
      _
    %p222 = scmp.lt.s32.totalorder %s11, 2
    // Predicated region
    $region21: #{be_relative_attn_forward.4} parent=5 // pred_check
      %p223 = pneg %p222
    $region22: #{be_relative_attn_forward.4} parent=5 // pred_check_branch
      %225 = sbr.rel (%p223) target = $region24
    $region23: #{be_relative_attn_forward.4} parent=5 // pred_region
      // Predicated region
      $region25: #{be_relative_attn_forward.4} parent=23 // pred_check
        %p226 = pneg %p52
      $region26: #{be_relative_attn_forward.4} parent=23 // pred_check_branch
        %228 = sbr.rel (%p226) target = $region28
      $region27: #{be_relative_attn_forward.4} parent=23 // pred_region
        %p229 = scmp.lt.s32.totalorder %s18, 1
        %s230 = scalar_select %p229, %s18, 1
        %p231 = scmp.lt.s32.totalorder %s19, 0
        %s232 = scalar_select %p231, %s19, 0
        %s233 = sadd.s32 %s232, %s230
        %s234 = smul.addr %s233, 8
        %s235 = scalar_lea.vmem %s0, %s234
      $region28: #{be_relative_attn_forward.4} parent=23 // pred_fallthru
        _
      // Predicated region
      $region29: #{be_relative_attn_forward.4} parent=23 // pred_check
        %p236 = pneg %p78
      $region30: #{be_relative_attn_forward.4} parent=23 // pred_check_branch
        %238 = sbr.rel (%p236) target = $region32
      $region31: #{be_relative_attn_forward.4} parent=23 // pred_region
        %p239 = scmp.lt.s32.totalorder %s18, 1
        %s240 = scalar_select %p239, %s18, 1
        %s241 = scalar_lea.vmem %s1, %s240
      $region32: #{be_relative_attn_forward.4} parent=23 // pred_fallthru
        _
      // Predicated region
      $region33: #{be_relative_attn_forward.4} parent=23 // pred_check
        %p242 = pneg %p106
      $region34: #{be_relative_attn_forward.4} parent=23 // pred_check_branch
        %244 = sbr.rel (%p242) target = $region36
      $region35: #{be_relative_attn_forward.4} parent=23 // pred_region
        %p245 = scmp.lt.s32.totalorder %s18, 1
        %s246 = scalar_select %p245, %s18, 1
        %p247 = scmp.lt.s32.totalorder %s20, 0
        %s248 = scalar_select %p247, %s20, 0
        %s249 = sadd.s32 %s248, %s246
        %s250 = scalar_lea.vmem %s2, %s249
      $region36: #{be_relative_attn_forward.4} parent=23 // pred_fallthru
        _
    $region24: #{be_relative_attn_forward.4} parent=5 // pred_fallthru
      _
    %p251 = scmp.le.s32.totalorder 1, %s11
    %p252 = scmp.lt.s32.totalorder %s11, 3
    %p253 = pnand %p251, %p252
    %p254 = pneg %p253
    // Predicated region
    $region37: #{be_relative_attn_forward.4} parent=5 // pred_check
      _
    $region38: #{be_relative_attn_forward.4} parent=5 // pred_check_branch
      %256 = sbr.rel (%p253) target = $region40
    $region39: #{be_relative_attn_forward.4} parent=5 // pred_region
      %s257 = ssub.s32 %s11, 1
      %p258 = scmp.lt.s32.totalorder %s21, 1
      %s259 = scalar_select %p258, %s21, 1
      %p260 = scmp.lt.s32.totalorder %s22, 0
      %s261 = scalar_select %p260, %s22, 0
      %s262 = sadd.s32 %s261, %s259
      %s263 = smul.addr %s262, 8
      %s264 = scalar_lea.vmem %s0, %s263
      %p265 = pneg %p58
      %p266 = pneg %p55
      %p267 = scmp.lt.s32.totalorder %s21, 1
      %s268 = scalar_select %p267, %s21, 1
      %s269 = scalar_lea.vmem %s1, %s268
      %p270 = pneg %p84
      %p271 = pneg %p81
      %p272 = scmp.lt.s32.totalorder %s21, 1
      %s273 = scalar_select %p272, %s21, 1
      %p274 = scmp.lt.s32.totalorder %s23, 0
      %s275 = scalar_select %p274, %s23, 0
      %s276 = sadd.s32 %s275, %s273
      %s277 = scalar_lea.vmem %s2, %s276
      %p278 = pneg %p112
      %p279 = pneg %p109
      %p280 = scmp.lt.s32.totalorder %s23, 0
      %s281 = scalar_select %p280, %s23, 0
      %s282 = smul.addr %s281, 8
      %s283 = scalar_lea.vmem %s3, %s282
      %p284 = pneg %p138
      %p285 = pneg %p135
      %p286 = scmp.lt.s32.totalorder %s23, 0
      %s287 = scalar_select %p286, %s23, 0
      %s288 = scalar_lea.vmem %s4, %s287
      %p289 = pneg %p164
      %p290 = pneg %p161
      %p291 = pneg %p194
      %p292 = pneg %p191
      %p293 = scmp.lt.s32.totalorder %s21, 1
      %s294 = scalar_select %p293, %s21, 1
      %p295 = scmp.lt.s32.totalorder %s22, 0
      %s296 = scalar_select %p295, %s22, 0
      %p297 = scmp.lt.s32.totalorder %s23, 0
      %s298 = scalar_select %p297, %s23, 0
      %s299 = sadd.s32 %s298, %s296
      %s300 = sadd.s32 %s299, %s294
      %s301 = smul.addr %s300, 8
      %s302 = scalar_lea.vmem %s5, %s301
      %p303 = scmp.lt.s32.totalorder %s21, 1
      %s304 = scalar_select %p303, %s21, 1
      %p305 = scmp.lt.s32.totalorder %s22, 0
      %s306 = scalar_select %p305, %s22, 0
      %s307 = sadd.s32 %s306, %s304
      %s308 = smul.addr %s307, 8
      %s309 = scalar_lea.vmem %s0, %s308
      %p310 = scmp.lt.s32.totalorder %s21, 1
      %s311 = scalar_select %p310, %s21, 1
      %s312 = scalar_lea.vmem %s1, %s311
      %p313 = scmp.lt.s32.totalorder %s21, 1
      %s314 = scalar_select %p313, %s21, 1
      %p315 = scmp.lt.s32.totalorder %s23, 0
      %s316 = scalar_select %p315, %s23, 0
      %s317 = sadd.s32 %s316, %s314
      %s318 = scalar_lea.vmem %s2, %s317
      %p319 = scmp.lt.s32.totalorder %s23, 0
      %s320 = scalar_select %p319, %s23, 0
      %s321 = smul.addr %s320, 8
      %s322 = scalar_lea.vmem %s3, %s321
      %p323 = scmp.lt.s32.totalorder %s23, 0
      %s324 = scalar_select %p323, %s23, 0
      %s325 = scalar_lea.vmem %s4, %s324
      %p326 = scmp.lt.s32.totalorder %s21, 1
      %s327 = scalar_select %p326, %s21, 1
      %p328 = scmp.lt.s32.totalorder %s22, 0
      %s329 = scalar_select %p328, %s22, 0
      %p330 = scmp.lt.s32.totalorder %s23, 0
      %s331 = scalar_select %p330, %s23, 0
      %s332 = sadd.s32 %s331, %s329
      %s333 = sadd.s32 %s332, %s327
      %s334 = smul.addr %s333, 8
      %s335 = scalar_lea.vmem %s5, %s334
      %v336 = vld [vmem:[%s309] sm:$0xff]
      %v337 = vld [vmem:[%s312] sm:$0x1]
      %v339 = vperm.slane %v337, 0
      %v341 = vmul.f32 %v336, %v339
      %v342 = vld [vmem:[%s322] sm:$0xff]
      %v343 = vld [vmem:[%s322 + $0x8] sm:$0xff]
      %v344 = vld [vmem:[%s322 + $0x10] sm:$0xff]
      %v345 = vld [vmem:[%s322 + $0x18] sm:$0xff]
      %vm346 = vcmask 261120
      %v348 = vsel %vm346, %v341, 0
      %350 = vmatpush.msra.mxu0 0.0
      %351 = vmatpush.msra.mxu0 0.0
      %352 = vmatpush.msra.mxu0 0.0
      %353 = vmatpush.msra.mxu0 0.0
      %354 = vmatpush.msra.mxu0 0.0
      %355 = vmatpush.msra.mxu0 0.0
      %356 = vmatpush.msra.mxu0 0.0
      %357 = vmatpush.msra.mxu0 0.0
      %358 = vmatpush.msra.mxu0 0.0
      %359 = vmatpush.msra.mxu0 0.0
      %360 = vmatpush.msra.mxu0 0.0
      %361 = vmatpush.msra.mxu0 0.0
      %362 = vmatpush.msra.mxu0 %v345
      %363 = vmatpush.msra.mxu0 %v344
      %364 = vmatpush.msra.mxu0 %v343
      %365 = vmatpush.msra.mxu0 %v342
      %366 = vmatmul.f32.gmra.mxu0 %v348
      %v367 = vpop.f32.mrf.mxu0
      %v368 = vadd.f32 0.0, %v367
      %369 = vdwg.mxu0
      %v370 = vld [vmem:[%s318] sm:$0x1]
      %v372 = vperm.slane %v370, 0
      %v374 = vmul.f32 %v368, %v372
      %v375 = vld [vmem:[%s325] sm:$0x1]
      %v377 = vperm.slane %v375, 0
      %v379 = vadd.f32 %v374, %v377
      %vm380 = vcmask 785408
      %381 = vst.msk [vmem:[%s335] sm:$0xff] %vm380, %v379
      %p382 = scmp.lt.s32.totalorder %s21, 1
      %s383 = scalar_select %p382, %s21, 1
      %p384 = scmp.lt.s32.totalorder %s22, 0
      %s385 = scalar_select %p384, %s22, 0
      %p386 = scmp.lt.s32.totalorder %s23, 0
      %s387 = scalar_select %p386, %s23, 0
      %s388 = sadd.s32 %s387, %s385
      %s389 = sadd.s32 %s388, %s383
      %s390 = smul.addr %s389, 8
      %s391 = scalar_lea.vmem %s5, %s390
      // Predicated region
      $region41: #{be_relative_attn_forward.4} parent=39 // pred_check
        %p392 = pneg %p191
      $region42: #{be_relative_attn_forward.4} parent=39 // pred_check_branch
        %394 = sbr.rel (%p392) target = $region44
      $region43: #{be_relative_attn_forward.4} parent=39 // pred_region
        _
      $region44: #{be_relative_attn_forward.4} parent=39 // pred_fallthru
        _
    $region40: #{be_relative_attn_forward.4} parent=5 // pred_fallthru
      _
    %p395 = scmp.le.s32.totalorder 2, %s11
    // Predicated region
    $region45: #{be_relative_attn_forward.4} parent=5 // pred_check
      %p396 = pneg %p395
    $region46: #{be_relative_attn_forward.4} parent=5 // pred_check_branch
      %398 = sbr.rel (%p396) target = $region48
    $region47: #{be_relative_attn_forward.4} parent=5 // pred_region
      %s399 = ssub.s32 %s11, 2
      // Predicated region
      $region49: #{be_relative_attn_forward.4} parent=47 // pred_check
        %p400 = pneg %p197
      $region50: #{be_relative_attn_forward.4} parent=47 // pred_check_branch
        %402 = sbr.rel (%p400) target = $region52
      $region51: #{be_relative_attn_forward.4} parent=47 // pred_region
        %p403 = scmp.lt.s32.totalorder %s24, 1
        %s404 = scalar_select %p403, %s24, 1
        %p405 = scmp.lt.s32.totalorder %s25, 0
        %s406 = scalar_select %p405, %s25, 0
        %p407 = scmp.lt.s32.totalorder %s26, 0
        %s408 = scalar_select %p407, %s26, 0
        %s409 = sadd.s32 %s408, %s406
        %s410 = sadd.s32 %s409, %s404
        %s411 = smul.addr %s410, 8
        %s412 = scalar_lea.vmem %s5, %s411
      $region52: #{be_relative_attn_forward.4} parent=47 // pred_fallthru
        _
    $region48: #{be_relative_attn_forward.4} parent=5 // pred_fallthru
      _
  $region6: #{be_relative_attn_forward.4} parent=0 // loop_footer
    %s15 = sadd.s32 1, %s11
  $region7: #{be_relative_attn_forward.4} parent=0 // loop_footer_branch
    %10 = sbr.rel target = $region3
  $region8: #{be_relative_attn_forward.4} parent=0 // loop_exit
    _

// kernel: be_relative_attn_forward.6
$region0: #{be_relative_attn_forward.6}
  #allocation0 [shape = 'u32[]', space=smem, size = 0x4, offset = 0x4, fixed_abs, tag = 'smem constant byte address 0x4 - core index']
  #allocation1 [shape = 'u32[72,128]{1,0:T(1,128)}', space=vmem, size = 0x9000, scoped, tag = 'internal scratch']
  %s0 = inlined_call_operand.vmem [shape: f32[2,4,8,8], index: 0, kind: input, shape index: {}]
  %s1 = inlined_call_operand.vmem [shape: f32[2,4,8,8], index: 1, kind: input, shape index: {}]
  %s2 = inlined_call_operand.vmem [shape: f32[2,4,8,8], index: 2, kind: input, shape index: {}]
  %s3 = inlined_call_operand.vmem [shape: f32[2,4,8,8], index: 3, kind: input, shape index: {}]
  %s4 = inlined_call_operand.vmem [shape: f32[4,1,8], index: 4, kind: input, shape index: {}]
  %s5 = inlined_call_operand.vmem [shape: f32[4,1,8], index: 5, kind: input, shape index: {}]
  %s6 = inlined_call_operand.vmem [shape: f32[2,4,8,8], index: 6, kind: output, shape index: {0}]
  %s7 = inlined_call_operand.hbm [shape: f32[2,4,8,8], index: 7, kind: output, shape index: {1}]
  %8 = xla_tuple %s6, %s7
  %s9 = sld [smem:[#allocation0]]
  $region65: #{be_relative_attn_forward.6} parent=0
    _
  %s11 = ssub.s32 1, %s9
  %s12 = scalar_select 0, %s11, %s9
  $region1: #{be_relative_attn_forward.6} parent=0
    #allocation2 [shape = 'u8[8192]{0}', space=vmem, size = 0x2000, scoped, tag = 'output window, operand 1']
    #allocation3 [shape = 's32[2]{0}', space=sflag, size = 0x8, scoped, tag = 'scoped memory for be_relative_attn_forward.6']
    %13 = vsyncpa [#allocation3], 0
    %s14 = scalar_lea.sflag [#allocation3], 1
    %15 = vsyncpa %s14, 0
    loop: start=0, step=1, limit=10
    $region2: #{be_relative_attn_forward.6} parent=1 // loop_pre_header
      _
    $region3: #{be_relative_attn_forward.6} parent=1 // loop_header
      %s17 = sphi 0, %s21
      %p18 = scmp.ge.s32.totalorder %s17, 10
      %s24 = sphi 0, %s36
      %s25 = sphi 0, %s32
      %s26 = sphi 0, %s24
      %s27 = sphi 0, %s25
      %s28 = sphi 0, %s26
      %s29 = sphi 0, %s27
      %s41 = sphi 0, %s43
      %s44 = sphi 0, %s41
      %s45 = sphi 0, %s44
      %s61 = sphi 0, %s45
      %s69 = sphi 0, %s71
      %s72 = sphi 0, %s69
      %s73 = sphi 0, %s72
      %s89 = sphi 0, %s73
      %s97 = sphi 0, %s99
      %s100 = sphi 0, %s97
      %s101 = sphi 0, %s100
      %s117 = sphi 0, %s101
      %s149 = sphi 0, %s151
      %s152 = sphi 0, %s149
      %s153 = sphi 0, %s152
      %s169 = sphi 0, %s153
      %s175 = sphi 0, %s177
      %s178 = sphi 0, %s175
      %s179 = sphi 0, %s178
      %s195 = sphi 0, %s179
      %s201 = sphi 0, %s203
      %s204 = sphi 0, %s201
      %s205 = sphi 0, %s204
      %s221 = sphi 0, %s205
      %s229 = sphi 0, %s231
      %s232 = sphi 0, %s229
      %s233 = sphi 0, %s232
      %s249 = sphi 0, %s233
      %s257 = sphi 0, %s259
      %s260 = sphi 0, %s257
      %s261 = sphi 0, %s260
      %s277 = sphi 0, %s261
    $region4: #{be_relative_attn_forward.6} parent=1 // loop_header_branch
      %20 = sbr.rel (%p18) target = $region8
    $region5: #{be_relative_attn_forward.6} parent=1 // loop_body
      %s22 = ssub.s32 %s17, 1
      %s23 = ssub.s32 %s17, 2
      %s30 = sadd.s32 1, %s25
      %p31 = scmp.ge.s32.totalorder %s30, 4
      %s32 = scalar_select %p31, 0, %s30
      %s33 = sadd.s32 1, %s24
      %s34 = scalar_select %p31, %s33, %s24
      %p35 = scmp.ge.s32.totalorder %s34, 2
      %s36 = scalar_select %p35, 0, %s34
      %s37 = ssub.s32 %s24, %s36
      %s38 = ssub.s32 %s25, %s32
      %s39 = sor.u32 %s37, %s38
      %p40 = scmp.eq.s32.totalorder %s39, 0
      %s42 = sadd.s32 %s41, 1
      %s43 = scalar_select %p40, %s41, %s42
      %p46 = pneg %p40
      %p47 = scmp.eq.s32.totalorder %s17, 7
      %p48 = por %p46, %p47
      %p49 = scmp.ne.s32.totalorder %s41, %s44
      %p50 = scmp.eq.s32.totalorder %s17, 0
      %p51 = por %p49, %p50
      %p52 = scmp.ne.s32.totalorder %s41, %s44
      %p53 = scmp.eq.s32.totalorder %s22, 7
      %p54 = por %p52, %p53
      %p55 = scmp.ne.s32.totalorder %s44, %s45
      %p56 = scmp.eq.s32.totalorder %s22, 0
      %p57 = por %p55, %p56
      %p58 = scmp.ne.s32.totalorder %s44, %s45
      %p59 = scmp.eq.s32.totalorder %s23, 7
      %p60 = por %p58, %p59
      %p62 = scmp.ne.s32.totalorder %s45, %s61
      %p63 = scmp.eq.s32.totalorder %s23, 0
      %p64 = por %p62, %p63
      %s65 = ssub.s32 %s24, %s36
      %s66 = ssub.s32 %s25, %s32
      %s67 = sor.u32 %s65, %s66
      %p68 = scmp.eq.s32.totalorder %s67, 0
      %s70 = sadd.s32 %s69, 1
      %s71 = scalar_select %p68, %s69, %s70
      %p74 = pneg %p68
      %p75 = scmp.eq.s32.totalorder %s17, 7
      %p76 = por %p74, %p75
      %p77 = scmp.ne.s32.totalorder %s69, %s72
      %p78 = scmp.eq.s32.totalorder %s17, 0
      %p79 = por %p77, %p78
      %p80 = scmp.ne.s32.totalorder %s69, %s72
      %p81 = scmp.eq.s32.totalorder %s22, 7
      %p82 = por %p80, %p81
      %p83 = scmp.ne.s32.totalorder %s72, %s73
      %p84 = scmp.eq.s32.totalorder %s22, 0
      %p85 = por %p83, %p84
      %p86 = scmp.ne.s32.totalorder %s72, %s73
      %p87 = scmp.eq.s32.totalorder %s23, 7
      %p88 = por %p86, %p87
      %p90 = scmp.ne.s32.totalorder %s73, %s89
      %p91 = scmp.eq.s32.totalorder %s23, 0
      %p92 = por %p90, %p91
      %s93 = ssub.s32 %s24, %s36
      %s94 = ssub.s32 %s25, %s32
      %s95 = sor.u32 %s93, %s94
      %p96 = scmp.eq.s32.totalorder %s95, 0
      %s98 = sadd.s32 %s97, 1
      %s99 = scalar_select %p96, %s97, %s98
      %p102 = pneg %p96
      %p103 = scmp.eq.s32.totalorder %s17, 7
      %p104 = por %p102, %p103
      %p105 = scmp.ne.s32.totalorder %s97, %s100
      %p106 = scmp.eq.s32.totalorder %s17, 0
      %p107 = por %p105, %p106
      %p108 = scmp.ne.s32.totalorder %s97, %s100
      %p109 = scmp.eq.s32.totalorder %s22, 7
      %p110 = por %p108, %p109
      %p111 = scmp.ne.s32.totalorder %s100, %s101
      %p112 = scmp.eq.s32.totalorder %s22, 0
      %p113 = por %p111, %p112
      %p114 = scmp.ne.s32.totalorder %s100, %s101
      %p115 = scmp.eq.s32.totalorder %s23, 7
      %p116 = por %p114, %p115
      %p118 = scmp.ne.s32.totalorder %s101, %s117
      %p119 = scmp.eq.s32.totalorder %s23, 0
      %p120 = por %p118, %p119
      %p121 = scmp.lt.s32.totalorder %s24, 0
      %s122 = ssub.s32 0, %s24
      %s123 = scalar_select %p121, %s122, %s24
      %s124 = sand.u32 %s123, 1
      %s125 = ssub.s32 0, %s124
      %s126 = scalar_select %p121, %s125, %s124
      %p127 = scmp.ne.s32.totalorder %s126, 0
      %p128 = scmp.lt.s32.totalorder %s126, 0
      %p129 = pnand %p128, %p127
      %p130 = pneg %p129
      %s131 = sadd.s32 %s126, 2
      %s132 = scalar_select %p130, %s131, %s126
      %p133 = scmp.lt.s32.totalorder %s36, 0
      %s134 = ssub.s32 0, %s36
      %s135 = scalar_select %p133, %s134, %s36
      %s136 = sand.u32 %s135, 1
      %s137 = ssub.s32 0, %s136
      %s138 = scalar_select %p133, %s137, %s136
      %p139 = scmp.ne.s32.totalorder %s138, 0
      %p140 = scmp.lt.s32.totalorder %s138, 0
      %p141 = pnand %p140, %p139
      %p142 = pneg %p141
      %s143 = sadd.s32 %s138, 2
      %s144 = scalar_select %p142, %s143, %s138
      %s145 = ssub.s32 %s132, %s144
      %s146 = ssub.s32 %s25, %s32
      %s147 = sor.u32 %s145, %s146
      %p148 = scmp.eq.s32.totalorder %s147, 0
      %s150 = sadd.s32 %s149, 1
      %s151 = scalar_select %p148, %s149, %s150
      %p154 = pneg %p148
      %p155 = scmp.eq.s32.totalorder %s17, 7
      %p156 = por %p154, %p155
      %p157 = scmp.ne.s32.totalorder %s149, %s152
      %p158 = scmp.eq.s32.totalorder %s17, 0
      %p159 = por %p157, %p158
      %p160 = scmp.ne.s32.totalorder %s149, %s152
      %p161 = scmp.eq.s32.totalorder %s22, 7
      %p162 = por %p160, %p161
      %p163 = scmp.ne.s32.totalorder %s152, %s153
      %p164 = scmp.eq.s32.totalorder %s22, 0
      %p165 = por %p163, %p164
      %p166 = scmp.ne.s32.totalorder %s152, %s153
      %p167 = scmp.eq.s32.totalorder %s23, 7
      %p168 = por %p166, %p167
      %p170 = scmp.ne.s32.totalorder %s153, %s169
      %p171 = scmp.eq.s32.totalorder %s23, 0
      %p172 = por %p170, %p171
      %s173 = ssub.s32 %s25, %s32
      %p174 = scmp.eq.s32.totalorder %s173, 0
      %s176 = sadd.s32 %s175, 1
      %s177 = scalar_select %p174, %s175, %s176
      %p180 = pneg %p174
      %p181 = scmp.eq.s32.totalorder %s17, 7
      %p182 = por %p180, %p181
      %p183 = scmp.ne.s32.totalorder %s175, %s178
      %p184 = scmp.eq.s32.totalorder %s17, 0
      %p185 = por %p183, %p184
      %p186 = scmp.ne.s32.totalorder %s175, %s178
      %p187 = scmp.eq.s32.totalorder %s22, 7
      %p188 = por %p186, %p187
      %p189 = scmp.ne.s32.totalorder %s178, %s179
      %p190 = scmp.eq.s32.totalorder %s22, 0
      %p191 = por %p189, %p190
      %p192 = scmp.ne.s32.totalorder %s178, %s179
      %p193 = scmp.eq.s32.totalorder %s23, 7
      %p194 = por %p192, %p193
      %p196 = scmp.ne.s32.totalorder %s179, %s195
      %p197 = scmp.eq.s32.totalorder %s23, 0
      %p198 = por %p196, %p197
      %s199 = ssub.s32 %s25, %s32
      %p200 = scmp.eq.s32.totalorder %s199, 0
      %s202 = sadd.s32 %s201, 1
      %s203 = scalar_select %p200, %s201, %s202
      %p206 = pneg %p200
      %p207 = scmp.eq.s32.totalorder %s17, 7
      %p208 = por %p206, %p207
      %p209 = scmp.ne.s32.totalorder %s201, %s204
      %p210 = scmp.eq.s32.totalorder %s17, 0
      %p211 = por %p209, %p210
      %p212 = scmp.ne.s32.totalorder %s201, %s204
      %p213 = scmp.eq.s32.totalorder %s22, 7
      %p214 = por %p212, %p213
      %p215 = scmp.ne.s32.totalorder %s204, %s205
      %p216 = scmp.eq.s32.totalorder %s22, 0
      %p217 = por %p215, %p216
      %p218 = scmp.ne.s32.totalorder %s204, %s205
      %p219 = scmp.eq.s32.totalorder %s23, 7
      %p220 = por %p218, %p219
      %p222 = scmp.ne.s32.totalorder %s205, %s221
      %p223 = scmp.eq.s32.totalorder %s23, 0
      %p224 = por %p222, %p223
      %s225 = ssub.s32 %s24, %s36
      %s226 = ssub.s32 %s25, %s32
      %s227 = sor.u32 %s225, %s226
      %p228 = scmp.eq.s32.totalorder %s227, 0
      %s230 = sadd.s32 %s229, 1
      %s231 = scalar_select %p228, %s229, %s230
      %p234 = pneg %p228
      %p235 = scmp.eq.s32.totalorder %s17, 7
      %p236 = por %p234, %p235
      %p237 = scmp.ne.s32.totalorder %s229, %s232
      %p238 = scmp.eq.s32.totalorder %s17, 0
      %p239 = por %p237, %p238
      %p240 = scmp.ne.s32.totalorder %s229, %s232
      %p241 = scmp.eq.s32.totalorder %s22, 7
      %p242 = por %p240, %p241
      %p243 = scmp.ne.s32.totalorder %s232, %s233
      %p244 = scmp.eq.s32.totalorder %s22, 0
      %p245 = por %p243, %p244
      %p246 = scmp.ne.s32.totalorder %s232, %s233
      %p247 = scmp.eq.s32.totalorder %s23, 7
      %p248 = por %p246, %p247
      %p250 = scmp.ne.s32.totalorder %s233, %s249
      %p251 = scmp.eq.s32.totalorder %s23, 0
      %p252 = por %p250, %p251
      %s253 = ssub.s32 %s24, %s36
      %s254 = ssub.s32 %s25, %s32
      %s255 = sor.u32 %s253, %s254
      %p256 = scmp.eq.s32.totalorder %s255, 0
      %s258 = sadd.s32 %s257, 1
      %s259 = scalar_select %p256, %s257, %s258
      %p262 = pneg %p256
      %p263 = scmp.eq.s32.totalorder %s17, 7
      %p264 = por %p262, %p263
      %p265 = scmp.ne.s32.totalorder %s257, %s260
      %p266 = scmp.eq.s32.totalorder %s17, 0
      %p267 = por %p265, %p266
      %p268 = scmp.ne.s32.totalorder %s257, %s260
      %p269 = scmp.eq.s32.totalorder %s22, 7
      %p270 = por %p268, %p269
      %p271 = scmp.ne.s32.totalorder %s260, %s261
      %p272 = scmp.eq.s32.totalorder %s22, 0
      %p273 = por %p271, %p272
      %p274 = scmp.ne.s32.totalorder %s260, %s261
      %p275 = scmp.eq.s32.totalorder %s23, 7
      %p276 = por %p274, %p275
      %p278 = scmp.ne.s32.totalorder %s261, %s277
      %p279 = scmp.eq.s32.totalorder %s23, 0
      %p280 = por %p278, %p279
      %p281 = scmp.le.s32.totalorder 1, %s17
      %p282 = scmp.lt.s32.totalorder %s17, 9
      %p283 = pnand %p281, %p282
      %p284 = pneg %p283
      // Predicated region
      $region9: #{be_relative_attn_forward.6} parent=5 // pred_check
        _
      $region10: #{be_relative_attn_forward.6} parent=5 // pred_check_branch
        %286 = sbr.rel (%p283) target = $region12
      $region11: #{be_relative_attn_forward.6} parent=5 // pred_region
        %s287 = ssub.s32 %s17, 1
      $region12: #{be_relative_attn_forward.6} parent=5 // pred_fallthru
        _
      %p288 = scmp.lt.s32.totalorder %s17, 8
      // Predicated region
      $region13: #{be_relative_attn_forward.6} parent=5 // pred_check
        %p289 = pneg %p288
      $region14: #{be_relative_attn_forward.6} parent=5 // pred_check_branch
        %291 = sbr.rel (%p289) target = $region16
      $region15: #{be_relative_attn_forward.6} parent=5 // pred_region
        // Predicated region
        $region17: #{be_relative_attn_forward.6} parent=15 // pred_check
          %p292 = pneg %p51
        $region18: #{be_relative_attn_forward.6} parent=15 // pred_check_branch
          %294 = sbr.rel (%p292) target = $region20
        $region19: #{be_relative_attn_forward.6} parent=15 // pred_region
          %p295 = scmp.lt.s32.totalorder %s24, 1
          %s296 = scalar_select %p295, %s24, 1
          %p297 = scmp.lt.s32.totalorder %s25, 3
          %s298 = scalar_select %p297, %s25, 3
          %s299 = smul.addr %s296, 4
          %s300 = sadd.s32 %s298, %s299
          %s301 = smul.addr %s300, 8
          %s302 = scalar_lea.vmem %s0, %s301
        $region20: #{be_relative_attn_forward.6} parent=15 // pred_fallthru
          _
        // Predicated region
        $region21: #{be_relative_attn_forward.6} parent=15 // pred_check
          %p303 = pneg %p79
        $region22: #{be_relative_attn_forward.6} parent=15 // pred_check_branch
          %305 = sbr.rel (%p303) target = $region24
        $region23: #{be_relative_attn_forward.6} parent=15 // pred_region
          %p306 = scmp.lt.s32.totalorder %s24, 1
          %s307 = scalar_select %p306, %s24, 1
          %p308 = scmp.lt.s32.totalorder %s25, 3
          %s309 = scalar_select %p308, %s25, 3
          %s310 = smul.addr %s307, 4
          %s311 = sadd.s32 %s309, %s310
          %s312 = smul.addr %s311, 8
          %s313 = scalar_lea.vmem %s1, %s312
        $region24: #{be_relative_attn_forward.6} parent=15 // pred_fallthru
          _
        // Predicated region
        $region25: #{be_relative_attn_forward.6} parent=15 // pred_check
          %p314 = pneg %p107
        $region26: #{be_relative_attn_forward.6} parent=15 // pred_check_branch
          %316 = sbr.rel (%p314) target = $region28
        $region27: #{be_relative_attn_forward.6} parent=15 // pred_region
          %p317 = scmp.lt.s32.totalorder %s24, 1
          %s318 = scalar_select %p317, %s24, 1
          %p319 = scmp.lt.s32.totalorder %s25, 3
          %s320 = scalar_select %p319, %s25, 3
          %s321 = smul.addr %s318, 4
          %s322 = sadd.s32 %s320, %s321
          %s323 = smul.addr %s322, 8
          %s324 = scalar_lea.vmem %s2, %s323
        $region28: #{be_relative_attn_forward.6} parent=15 // pred_fallthru
          _
        // Predicated region
        $region29: #{be_relative_attn_forward.6} parent=15 // pred_check
          %p325 = pneg %p159
        $region30: #{be_relative_attn_forward.6} parent=15 // pred_check_branch
          %327 = sbr.rel (%p325) target = $region32
        $region31: #{be_relative_attn_forward.6} parent=15 // pred_region
          %p328 = scmp.lt.s32.totalorder %s24, 0
          %s329 = ssub.s32 0, %s24
          %s330 = scalar_select %p328, %s329, %s24
          %s331 = sand.u32 %s330, 1
          %s332 = ssub.s32 0, %s331
          %s333 = scalar_select %p328, %s332, %s331
          %p334 = scmp.ne.s32.totalorder %s333, 0
          %p335 = scmp.lt.s32.totalorder %s333, 0
          %p336 = pnand %p335, %p334
          %p337 = pneg %p336
          %s338 = sadd.s32 %s333, 2
          %s339 = scalar_select %p337, %s338, %s333
          %p340 = scmp.lt.s32.totalorder %s339, 1
          %s341 = scalar_select %p340, %s339, 1
          %p342 = scmp.lt.s32.totalorder %s25, 3
          %s343 = scalar_select %p342, %s25, 3
          %s344 = smul.addr %s341, 4
          %s345 = sadd.s32 %s343, %s344
          %s346 = smul.addr %s345, 8
          %s347 = scalar_lea.vmem %s3, %s346
          %p348 = scmp.lt.s32.totalorder %s24, 0
          %s349 = ssub.s32 0, %s24
          %s350 = scalar_select %p348, %s349, %s24
          %s351 = sand.u32 %s350, 1
          %s352 = ssub.s32 0, %s351
          %s353 = scalar_select %p348, %s352, %s351
          %p354 = scmp.ne.s32.totalorder %s353, 0
          %p355 = scmp.lt.s32.totalorder %s353, 0
          %p356 = pnand %p355, %p354
          %p357 = pneg %p356
          %s358 = sadd.s32 %s353, 2
          %s359 = scalar_select %p357, %s358, %s353
        $region32: #{be_relative_attn_forward.6} parent=15 // pred_fallthru
          _
        // Predicated region
        $region33: #{be_relative_attn_forward.6} parent=15 // pred_check
          %p360 = pneg %p185
        $region34: #{be_relative_attn_forward.6} parent=15 // pred_check_branch
          %362 = sbr.rel (%p360) target = $region36
        $region35: #{be_relative_attn_forward.6} parent=15 // pred_region
          %p363 = scmp.lt.s32.totalorder %s25, 3
          %s364 = scalar_select %p363, %s25, 3
          %s365 = scalar_lea.vmem %s4, %s364
        $region36: #{be_relative_attn_forward.6} parent=15 // pred_fallthru
          _
        // Predicated region
        $region37: #{be_relative_attn_forward.6} parent=15 // pred_check
          %p366 = pneg %p211
        $region38: #{be_relative_attn_forward.6} parent=15 // pred_check_branch
          %368 = sbr.rel (%p366) target = $region40
        $region39: #{be_relative_attn_forward.6} parent=15 // pred_region
          %p369 = scmp.lt.s32.totalorder %s25, 3
          %s370 = scalar_select %p369, %s25, 3
          %s371 = scalar_lea.vmem %s5, %s370
        $region40: #{be_relative_attn_forward.6} parent=15 // pred_fallthru
          _
      $region16: #{be_relative_attn_forward.6} parent=5 // pred_fallthru
        _
      %p372 = scmp.le.s32.totalorder 1, %s17
      %p373 = scmp.lt.s32.totalorder %s17, 9
      %p374 = pnand %p372, %p373
      %p375 = pneg %p374
      // Predicated region
      $region41: #{be_relative_attn_forward.6} parent=5 // pred_check
        _
      $region42: #{be_relative_attn_forward.6} parent=5 // pred_check_branch
        %377 = sbr.rel (%p374) target = $region44
      $region43: #{be_relative_attn_forward.6} parent=5 // pred_region
        %s378 = ssub.s32 %s17, 1
        %p379 = scmp.lt.s32.totalorder %s26, 1
        %s380 = scalar_select %p379, %s26, 1
        %p381 = scmp.lt.s32.totalorder %s27, 3
        %s382 = scalar_select %p381, %s27, 3
        %s383 = smul.addr %s380, 4
        %s384 = sadd.s32 %s382, %s383
        %s385 = smul.addr %s384, 8
        %s386 = scalar_lea.vmem %s0, %s385
        %p387 = pneg %p57
        %p388 = pneg %p54
        %p389 = scmp.lt.s32.totalorder %s26, 1
        %s390 = scalar_select %p389, %s26, 1
        %p391 = scmp.lt.s32.totalorder %s27, 3
        %s392 = scalar_select %p391, %s27, 3
        %s393 = smul.addr %s390, 4
        %s394 = sadd.s32 %s392, %s393
        %s395 = smul.addr %s394, 8
        %s396 = scalar_lea.vmem %s1, %s395
        %p397 = pneg %p85
        %p398 = pneg %p82
        %p399 = scmp.lt.s32.totalorder %s26, 1
        %s400 = scalar_select %p399, %s26, 1
        %p401 = scmp.lt.s32.totalorder %s27, 3
        %s402 = scalar_select %p401, %s27, 3
        %s403 = smul.addr %s400, 4
        %s404 = sadd.s32 %s402, %s403
        %s405 = smul.addr %s404, 8
        %s406 = scalar_lea.vmem %s2, %s405
        %p407 = pneg %p113
        %p408 = pneg %p110
        %p409 = scmp.lt.s32.totalorder %s26, 0
        %s410 = ssub.s32 0, %s26
        %s411 = scalar_select %p409, %s410, %s26
        %s412 = sand.u32 %s411, 1
        %s413 = ssub.s32 0, %s412
        %s414 = scalar_select %p409, %s413, %s412
        %p415 = scmp.ne.s32.totalorder %s414, 0
        %p416 = scmp.lt.s32.totalorder %s414, 0
        %p417 = pnand %p416, %p415
        %p418 = pneg %p417
        %s419 = sadd.s32 %s414, 2
        %s420 = scalar_select %p418, %s419, %s414
        %p421 = scmp.lt.s32.totalorder %s420, 1
        %s422 = scalar_select %p421, %s420, 1
        %p423 = scmp.lt.s32.totalorder %s27, 3
        %s424 = scalar_select %p423, %s27, 3
        %s425 = smul.addr %s422, 4
        %s426 = sadd.s32 %s424, %s425
        %s427 = smul.addr %s426, 8
        %s428 = scalar_lea.vmem %s3, %s427
        %p429 = pneg %p165
        %p430 = pneg %p162
        %p431 = scmp.lt.s32.totalorder %s27, 3
        %s432 = scalar_select %p431, %s27, 3
        %s433 = scalar_lea.vmem %s4, %s432
        %p434 = pneg %p191
        %p435 = pneg %p188
        %p436 = scmp.lt.s32.totalorder %s27, 3
        %s437 = scalar_select %p436, %s27, 3
        %s438 = scalar_lea.vmem %s5, %s437
        %p439 = pneg %p217
        %p440 = pneg %p214
        %p441 = pneg %p245
        %p442 = pneg %p242
        %p443 = scmp.lt.s32.totalorder %s26, 1
        %s444 = scalar_select %p443, %s26, 1
        %p445 = scmp.lt.s32.totalorder %s27, 3
        %s446 = scalar_select %p445, %s27, 3
        %s447 = smul.addr %s444, 4
        %s448 = sadd.s32 %s446, %s447
        %s449 = smul.addr %s448, 8
        %s450 = scalar_lea.vmem %s6, %s449
        %p451 = pneg %p273
        %p452 = pneg %p270
        %s453 = sand.u32 %s260, 1
        %s454 = scalar_lea.sflag [#allocation3], %s453
        %s455 = sand.u32 %s260, 1
        %s456 = smul.addr %s455, 8
        %s457 = scalar_lea.vmem [#allocation2], %s456
        %p458 = scmp.lt.s32.totalorder %s26, 1
        %s459 = scalar_select %p458, %s26, 1
        %p460 = scmp.lt.s32.totalorder %s27, 3
        %s461 = scalar_select %p460, %s27, 3
        %s462 = smul.addr %s459, 4
        %s463 = sadd.s32 %s461, %s462
        %s464 = smul.addr %s463, 8
        %s465 = scalar_lea.vmem %s0, %s464
        %p466 = scmp.lt.s32.totalorder %s26, 1
        %s467 = scalar_select %p466, %s26, 1
        %p468 = scmp.lt.s32.totalorder %s27, 3
        %s469 = scalar_select %p468, %s27, 3
        %s470 = smul.addr %s467, 4
        %s471 = sadd.s32 %s469, %s470
        %s472 = smul.addr %s471, 8
        %s473 = scalar_lea.vmem %s1, %s472
        %p474 = scmp.lt.s32.totalorder %s26, 1
        %s475 = scalar_select %p474, %s26, 1
        %p476 = scmp.lt.s32.totalorder %s27, 3
        %s477 = scalar_select %p476, %s27, 3
        %s478 = smul.addr %s475, 4
        %s479 = sadd.s32 %s477, %s478
        %s480 = smul.addr %s479, 8
        %s481 = scalar_lea.vmem %s2, %s480
        %p482 = scmp.lt.s32.totalorder %s26, 0
        %s483 = ssub.s32 0, %s26
        %s484 = scalar_select %p482, %s483, %s26
        %s485 = sand.u32 %s484, 1
        %s486 = ssub.s32 0, %s485
        %s487 = scalar_select %p482, %s486, %s485
        %p488 = scmp.ne.s32.totalorder %s487, 0
        %p489 = scmp.lt.s32.totalorder %s487, 0
        %p490 = pnand %p489, %p488
        %p491 = pneg %p490
        %s492 = sadd.s32 %s487, 2
        %s493 = scalar_select %p491, %s492, %s487
        %p494 = scmp.lt.s32.totalorder %s493, 1
        %s495 = scalar_select %p494, %s493, 1
        %p496 = scmp.lt.s32.totalorder %s27, 3
        %s497 = scalar_select %p496, %s27, 3
        %s498 = smul.addr %s495, 4
        %s499 = sadd.s32 %s497, %s498
        %s500 = smul.addr %s499, 8
        %s501 = scalar_lea.vmem %s3, %s500
        %p502 = scmp.lt.s32.totalorder %s26, 0
        %s503 = ssub.s32 0, %s26
        %s504 = scalar_select %p502, %s503, %s26
        %s505 = sand.u32 %s504, 1
        %s506 = ssub.s32 0, %s505
        %s507 = scalar_select %p502, %s506, %s505
        %p508 = scmp.ne.s32.totalorder %s507, 0
        %p509 = scmp.lt.s32.totalorder %s507, 0
        %p510 = pnand %p509, %p508
        %p511 = pneg %p510
        %s512 = sadd.s32 %s507, 2
        %s513 = scalar_select %p511, %s512, %s507
        %p514 = scmp.lt.s32.totalorder %s27, 3
        %s515 = scalar_select %p514, %s27, 3
        %s516 = scalar_lea.vmem %s4, %s515
        %p517 = scmp.lt.s32.totalorder %s27, 3
        %s518 = scalar_select %p517, %s27, 3
        %s519 = scalar_lea.vmem %s5, %s518
        %p520 = scmp.lt.s32.totalorder %s26, 1
        %s521 = scalar_select %p520, %s26, 1
        %p522 = scmp.lt.s32.totalorder %s27, 3
        %s523 = scalar_select %p522, %s27, 3
        %s524 = smul.addr %s521, 4
        %s525 = sadd.s32 %s523, %s524
        %s526 = smul.addr %s525, 8
        %s527 = scalar_lea.vmem %s6, %s526
        %v528 = vld [vmem:[%s465] sm:$0xff]
        %v529 = vld [vmem:[%s473] sm:$0xff]
        %v530 = vld [vmem:[%s481] sm:$0xff]
        %v531 = vld [vmem:[%s501] sm:$0xff]
        %v532 = vld [vmem:[%s516] sm:$0x1]
        %v533 = vld [vmem:[%s519] sm:$0x1]
        %v535 = vperm.slane %v532, 0
        %v537 = vadd.f32 %v528, %v535
        %v538 = vmul.f32 %v537, 0.35355338
        %v540 = vperm.slane %v533, 0
        %v542 = vadd.f32 %v528, %v540
        %v543 = vmul.f32 %v542, 0.35355338
        %vm544 = vcmask 64512
        %v546 = vsel %vm544, %v543, 0
        %v549 = vsel %vm544, %v531, 0
        %551 = vmatpush.xpose.msra.mxu0 0.0
        %552 = vmatpush.xpose.msra.mxu0 0.0
        %553 = vmatpush.xpose.msra.mxu0 0.0
        %554 = vmatpush.xpose.msra.mxu0 0.0
        %555 = vmatpush.xpose.msra.mxu0 0.0
        %556 = vmatpush.xpose.msra.mxu0 0.0
        %557 = vmatpush.xpose.msra.mxu0 0.0
        %558 = vmatpush.xpose.msra.mxu0 0.0
        %559 = vmatpush.xpose.msra.mxu0 0.0
        %560 = vmatpush.xpose.msra.mxu0 0.0
        %561 = vmatpush.xpose.msra.mxu0 0.0
        %562 = vmatpush.xpose.msra.mxu0 0.0
        %563 = vmatpush.xpose.msra.mxu0 0.0
        %564 = vmatpush.xpose.msra.mxu0 0.0
        %565 = vmatpush.xpose.msra.mxu0 0.0
        %566 = vmatpush.xpose.msra.mxu0 %v549
        %567 = vmatmul.f32.gmra.mxu0 %v546
        %v568 = vpop.f32.mrf.mxu0
        %v569 = vadd.f32 0.0, %v568
        %570 = vdwg.mxu0
        %v572 = vrot.slane %v569, 1
        %vm574 = vcmask 1046528
        %v575 = vsel %vm574, %v572, 0.0
        %577 = vrot.lane.b32.xlu0 %v575, 9
        %v578 = vpop.permute.xlu0 %577
        %v580 = vsel %vm544, %v569, 0.0
        %vm581 = vcmask 72704
        %v582 = vsel %vm581, %v580, %v578
        %v583 = vlaneseq
        %v584 = vshrl.u32 %v583, 7
        %v585 = vsub.s32 7, %v584
        %587 = vrot.lane.b32.xlu0 %v582, 127
        %v588 = vpop.permute.xlu0 %587
        %vm590 = vcmask 130048
        %v591 = vsel %vm590, %v588, 0.0
        %v592 = vand.u32 %v585, 1
        %vm593 = vcmp.ne.s32.totalorder %v592, 0
        %v594 = vsel %vm593, 1, 0
        %vm595 = vcmp.eq.s32.totalorder %v594, 1
        %v596 = vsel %vm595, %v591, %v582
        %598 = vrot.lane.b32.xlu0 %v596, 126
        %v599 = vpop.permute.xlu0 %598
        %vm601 = vcmask 121856
        %v602 = vsel %vm601, %v599, 0.0
        %v603 = vand.u32 %v585, 2
        %vm604 = vcmp.ne.s32.totalorder %v603, 0
        %v605 = vsel %vm604, 1, 0
        %vm606 = vcmp.eq.s32.totalorder %v605, 1
        %v607 = vsel %vm606, %v602, %v596
        %609 = vrot.lane.b32.xlu0 %v607, 124
        %v610 = vpop.permute.xlu0 %609
        %vm612 = vcmask 105472
        %v613 = vsel %vm612, %v610, 0.0
        %v614 = vand.u32 %v585, 4
        %vm615 = vcmp.ne.s32.totalorder %v614, 0
        %v616 = vsel %vm615, 1, 0
        %vm617 = vcmp.eq.s32.totalorder %v616, 1
        %v618 = vsel %vm617, %v613, %v607
        %v620 = vsel %vm544, %v538, 0
        %v623 = vsel %vm544, %v529, 0
        %625 = vmatpush.xpose.msra.mxu0 0.0
        %626 = vmatpush.xpose.msra.mxu0 0.0
        %627 = vmatpush.xpose.msra.mxu0 0.0
        %628 = vmatpush.xpose.msra.mxu0 0.0
        %629 = vmatpush.xpose.msra.mxu0 0.0
        %630 = vmatpush.xpose.msra.mxu0 0.0
        %631 = vmatpush.xpose.msra.mxu0 0.0
        %632 = vmatpush.xpose.msra.mxu0 0.0
        %633 = vmatpush.xpose.msra.mxu0 0.0
        %634 = vmatpush.xpose.msra.mxu0 0.0
        %635 = vmatpush.xpose.msra.mxu0 0.0
        %636 = vmatpush.xpose.msra.mxu0 0.0
        %637 = vmatpush.xpose.msra.mxu0 0.0
        %638 = vmatpush.xpose.msra.mxu0 0.0
        %639 = vmatpush.xpose.msra.mxu0 0.0
        %640 = vmatpush.xpose.msra.mxu0 %v623
        %641 = vmatmul.f32.gmra.mxu0 %v620
        %v642 = vpop.f32.mrf.mxu0
        %v643 = vadd.f32 %v618, %v642
        %644 = vdwg.mxu0
        %v645 = vsel %vm544, %v643, -inf
        %646 = vmax.xlane.f32.xlu0 %v645
        %v647 = vpop.xlane.xlu0 %646
        %v648 = vsub.f32 %v643, %v647
        %v649 = vmul.f32 %v648, 1.442695
        %v650 = vpow.pop %v649
        %v651 = vsel %vm544, %v650, 0.0
        %652 = vadd.xlane.f32.xlu0 %v651
        %v653 = vpop.xlane.xlu0 %652
        %v654 = vrcp.pop %v653
        %v655 = vmul.f32 %v653, %v654
        %v656 = vsub.f32 1.0, %v655
        %v657 = vmul.f32 %v654, %v656
        %v658 = vadd.f32 %v654, %v657
        %vm659 = vweird.f32 %v653
        %vm660 = vweird.f32 %v654
        %vm661 = vmor %vm659, %vm660
        %v662 = vsel %vm661, %v654, %v658
        %v663 = vand.u32 2147483647, %v653
        %vm664 = vcmp.eq.f32.partialorder %v663, 8.507059e+37
        %v665 = vand.u32 %v653, 2147483648
        %v666 = vor.u32 1.1754944e-38, %v665
        %v667 = vsel %vm664, %v666, %v662
        %v668 = vmul.f32 %v650, %v667
        %669 = vst.msk [vmem:[%s457] sm:$0xff] %vm544, %v668
        %v671 = vsel %vm544, %v668, 0
        %673 = vmatpush.msra.mxu0 0.0
        %674 = vmatpush.msra.mxu0 0.0
        %675 = vmatpush.msra.mxu0 0.0
        %676 = vmatpush.msra.mxu0 0.0
        %677 = vmatpush.msra.mxu0 0.0
        %678 = vmatpush.msra.mxu0 0.0
        %679 = vmatpush.msra.mxu0 0.0
        %680 = vmatpush.msra.mxu0 0.0
        %681 = vmatpush.msra.mxu0 0.0
        %682 = vmatpush.msra.mxu0 0.0
        %683 = vmatpush.msra.mxu0 0.0
        %684 = vmatpush.msra.mxu0 0.0
        %685 = vmatpush.msra.mxu0 0.0
        %686 = vmatpush.msra.mxu0 0.0
        %687 = vmatpush.msra.mxu0 0.0
        %688 = vmatpush.msra.mxu0 %v530
        %689 = vmatmul.f32.gmra.mxu0 %v671
        %v690 = vpop.f32.mrf.mxu0
        %v691 = vadd.f32 0.0, %v690
        %692 = vdwg.mxu0
        %693 = vst.msk [vmem:[%s527] sm:$0xff] %vm544, %v691
        %p694 = scmp.lt.s32.totalorder %s26, 1
        %s695 = scalar_select %p694, %s26, 1
        %p696 = scmp.lt.s32.totalorder %s27, 3
        %s697 = scalar_select %p696, %s27, 3
        %s698 = smul.addr %s695, 4
        %s699 = sadd.s32 %s697, %s698
        %s700 = smul.addr %s699, 8
        %s701 = scalar_lea.vmem %s6, %s700
        %s702 = sand.u32 %s260, 1
        %s703 = scalar_lea.sflag [#allocation3], %s702
        %s704 = sand.u32 %s260, 1
        %s705 = smul.addr %s704, 8
        %s706 = scalar_lea.vmem [#allocation2], %s705
        // Predicated region
        $region45: #{be_relative_attn_forward.6} parent=43 // pred_check
          %p707 = pneg %p242
        $region46: #{be_relative_attn_forward.6} parent=43 // pred_check_branch
          %709 = sbr.rel (%p707) target = $region48
        $region47: #{be_relative_attn_forward.6} parent=43 // pred_region
          _
        $region48: #{be_relative_attn_forward.6} parent=43 // pred_fallthru
          _
        // Predicated region
        $region49: #{be_relative_attn_forward.6} parent=43 // pred_check
          %p710 = pneg %p270
        $region50: #{be_relative_attn_forward.6} parent=43 // pred_check_branch
          %712 = sbr.rel (%p710) target = $region52
        $region51: #{be_relative_attn_forward.6} parent=43 // pred_region
          %714 = vsyncadd %s703, 0
          %s715 = smul.addr %s26, 4
          %s716 = sadd.s32 %s27, %s715
          %s717 = smul.addr %s716, 8
          %s718 = scalar_lea.hbm %s7, %s717
          %s720 = sshll.u32 %s706, 4
          %s721 = int_to_ptr.vmem [resolvable:$true] %s720
          %s722 = sshll.u32 %s718, 4
          %s723 = int_to_ptr.hbm [resolvable:$true] %s722
          %725 = dma.vmem_to_hbm [thread:$0]  %s721, 128, %s723, %s703
        $region52: #{be_relative_attn_forward.6} parent=43 // pred_fallthru
          _
      $region44: #{be_relative_attn_forward.6} parent=5 // pred_fallthru
        _
      %p726 = scmp.le.s32.totalorder 2, %s17
      // Predicated region
      $region53: #{be_relative_attn_forward.6} parent=5 // pred_check
        %p727 = pneg %p726
      $region54: #{be_relative_attn_forward.6} parent=5 // pred_check_branch
        %729 = sbr.rel (%p727) target = $region56
      $region55: #{be_relative_attn_forward.6} parent=5 // pred_region
        %s730 = ssub.s32 %s17, 2
        // Predicated region
        $region57: #{be_relative_attn_forward.6} parent=55 // pred_check
          %p731 = pneg %p248
        $region58: #{be_relative_attn_forward.6} parent=55 // pred_check_branch
          %733 = sbr.rel (%p731) target = $region60
        $region59: #{be_relative_attn_forward.6} parent=55 // pred_region
          %p734 = scmp.lt.s32.totalorder %s28, 1
          %s735 = scalar_select %p734, %s28, 1
          %p736 = scmp.lt.s32.totalorder %s29, 3
          %s737 = scalar_select %p736, %s29, 3
          %s738 = smul.addr %s735, 4
          %s739 = sadd.s32 %s737, %s738
          %s740 = smul.addr %s739, 8
          %s741 = scalar_lea.vmem %s6, %s740
        $region60: #{be_relative_attn_forward.6} parent=55 // pred_fallthru
          _
        // Predicated region
        $region61: #{be_relative_attn_forward.6} parent=55 // pred_check
          %p742 = pneg %p276
        $region62: #{be_relative_attn_forward.6} parent=55 // pred_check_branch
          %744 = sbr.rel (%p742) target = $region64
        $region63: #{be_relative_attn_forward.6} parent=55 // pred_region
          %s745 = sand.u32 %s261, 1
          %s746 = scalar_lea.sflag [#allocation3], %s745
          %s747 = sand.u32 %s261, 1
          %s748 = smul.addr %s747, 8
          %s749 = scalar_lea.vmem [#allocation2], %s748
          %751 = dma.done %s746, 128
        $region64: #{be_relative_attn_forward.6} parent=55 // pred_fallthru
          _
      $region56: #{be_relative_attn_forward.6} parent=5 // pred_fallthru
        _
    $region6: #{be_relative_attn_forward.6} parent=1 // loop_footer
      %s21 = sadd.s32 1, %s17
    $region7: #{be_relative_attn_forward.6} parent=1 // loop_footer_branch
      %16 = sbr.rel target = $region3
    $region8: #{be_relative_attn_forward.6} parent=1 // loop_exit
      _
    %752 = vsyncpa [#allocation3], 1
    %s753 = scalar_lea.sflag [#allocation3], 1
    %754 = vsyncpa %s753, 1

// kernel: be_relative_attn_forward.7
$region0: #{be_relative_attn_forward.7}
  #allocation0 [shape = 'u32[]', space=smem, size = 0x4, offset = 0x4, fixed_abs, tag = 'smem constant byte address 0x4 - core index']
  #allocation1 [shape = 'u32[72,128]{1,0:T(1,128)}', space=vmem, size = 0x9000, scoped, tag = 'internal scratch']
  %s0 = inlined_call_operand.vmem [shape: f32[16,32], index: 0, kind: input, shape index: {}]
  %s1 = inlined_call_operand.vmem [shape: f32[32,32], index: 1, kind: input, shape index: {}]
  %s2 = inlined_call_operand.vmem [shape: f32[1,32], index: 2, kind: input, shape index: {}]
  %s3 = inlined_call_operand.hbm [shape: f32[16,32], index: 3, kind: output, shape index: {}]
  %s4 = sld [smem:[#allocation0]]
  $region22: #{be_relative_attn_forward.7} parent=0
    _
  %s6 = ssub.s32 1, %s4
  %s7 = scalar_select 0, %s6, %s4
  $region1: #{be_relative_attn_forward.7} parent=0
    #allocation2 [shape = 'u8[8192]{0}', space=vmem, size = 0x2000, scoped, tag = 'output window, operand 0, single buffered']
    #allocation3 [shape = 's32[1]{0}', space=sflag, size = 0x4, scoped, tag = 'scoped memory for be_relative_attn_forward.7']
    %8 = vsyncpa [#allocation3], 0
    // Predicated region
    $region2: #{be_relative_attn_forward.7} parent=1 // pred_check
      _
    $region3: #{be_relative_attn_forward.7} parent=1 // pred_check_branch
      %10 = sbr.rel (0) target = $region5
    $region4: #{be_relative_attn_forward.7} parent=1 // pred_region
      _
    $region5: #{be_relative_attn_forward.7} parent=1 // pred_fallthru
      _
    // Predicated region
    $region6: #{be_relative_attn_forward.7} parent=1 // pred_check
      _
    $region7: #{be_relative_attn_forward.7} parent=1 // pred_check_branch
      %12 = sbr.rel (0) target = $region9
    $region8: #{be_relative_attn_forward.7} parent=1 // pred_region
      _
    $region9: #{be_relative_attn_forward.7} parent=1 // pred_fallthru
      _
    // Predicated region
    $region10: #{be_relative_attn_forward.7} parent=1 // pred_check
      _
    $region11: #{be_relative_attn_forward.7} parent=1 // pred_check_branch
      %14 = sbr.rel (0) target = $region13
    $region12: #{be_relative_attn_forward.7} parent=1 // pred_region
      _
    $region13: #{be_relative_attn_forward.7} parent=1 // pred_fallthru
      _
    %v15 = vld [vmem:[%s0] sm:$0xff]
    %v16 = vld [vmem:[%s0 + $0x8] sm:$0xff]
    %v17 = vld [vmem:[%s1] sm:$0xff]
    %v18 = vld [vmem:[%s1 + $0x8] sm:$0xff]
    %v19 = vld [vmem:[%s1 + $0x10] sm:$0xff]
    %v20 = vld [vmem:[%s1 + $0x18] sm:$0xff]
    %v21 = vld [vmem:[%s2] sm:$0x1]
    %v23 = vperm.slane %v21, 0
    %vm25 = vcmask 261120
    %v27 = vsel %vm25, %v15, 0
    %v30 = vsel %vm25, %v16, 0
    %32 = vmatpush.msra.mxu0 0.0
    %33 = vmatpush.msra.mxu0 0.0
    %34 = vmatpush.msra.mxu0 0.0
    %35 = vmatpush.msra.mxu0 0.0
    %36 = vmatpush.msra.mxu0 0.0
    %37 = vmatpush.msra.mxu0 0.0
    %38 = vmatpush.msra.mxu0 0.0
    %39 = vmatpush.msra.mxu0 0.0
    %40 = vmatpush.msra.mxu0 0.0
    %41 = vmatpush.msra.mxu0 0.0
    %42 = vmatpush.msra.mxu0 0.0
    %43 = vmatpush.msra.mxu0 0.0
    %44 = vmatpush.msra.mxu0 %v20
    %45 = vmatpush.msra.mxu0 %v19
    %46 = vmatpush.msra.mxu0 %v18
    %47 = vmatpush.msra.mxu0 %v17
    %48 = vmatmul.f32.gmra.mxu0 %v27
    %v49 = vpop.f32.mrf.mxu0
    %v50 = vadd.f32 %v23, %v49
    %51 = vmatmul.f32.gmra.mxu0 %v30
    %v52 = vpop.f32.mrf.mxu0
    %v53 = vadd.f32 %v23, %v52
    %54 = vdwg.mxu0
    %55 = vst.msk [vmem:[#allocation2] sm:$0xff] %vm25, %v50
    %56 = vst.msk [vmem:[#allocation2 + $0x8] sm:$0xff] %vm25, %v53
    // Predicated region
    $region14: #{be_relative_attn_forward.7} parent=1 // pred_check
      _
    $region15: #{be_relative_attn_forward.7} parent=1 // pred_check_branch
      %58 = sbr.rel (0) target = $region17
    $region16: #{be_relative_attn_forward.7} parent=1 // pred_region
      %60 = vsyncadd [#allocation3], 0
      %s61 = sshll.u32 [#allocation2], 4
      %s62 = int_to_ptr.vmem [resolvable:$true] %s61
      %s63 = sshll.u32 %s3, 4
      %s64 = int_to_ptr.hbm [resolvable:$true] %s63
      %69 = dma.vmem_to_hbm [thread:$0]  %s62, 256, %s64, [#allocation3], 128, 128, 8
    $region17: #{be_relative_attn_forward.7} parent=1 // pred_fallthru
      _
    // Predicated region
    $region18: #{be_relative_attn_forward.7} parent=1 // pred_check
      _
    $region19: #{be_relative_attn_forward.7} parent=1 // pred_check_branch
      %71 = sbr.rel (0) target = $region21
    $region20: #{be_relative_attn_forward.7} parent=1 // pred_region
      %73 = dma.done [#allocation3], 256
    $region21: #{be_relative_attn_forward.7} parent=1 // pred_fallthru
      _
    %74 = vsyncpa [#allocation3], 1

</llo_original>
